<compile_context>
chip_gen: v7x
topology: tpu7x:2x2x1
jax: 0.10.0
libtpu: 0.0.40
codegen_flags: <defaults>
</compile_context>

<pallas_src>
import functools

import jax
import jax.numpy as jnp
from jax import lax
from jax.experimental import pallas as pl
from jax.experimental.pallas import tpu as pltpu


# ----------------------------------------------------------------------------
# Pallas kernel: per (batch, N-tile) point aggregation — two MXU matmuls.
# ----------------------------------------------------------------------------
def _point_kernel(x_ref, wlog_ref, wval_ref, bd_ref, out_ref, *, kn):
    xb = x_ref[0]                                       # (C, TN)      f32
    w_log = wlog_ref[0]                                 # (Kn+Kl, C)   bf16
    w_val = wval_ref[0]                                 # (C, Kn+Kl)   bf16

    # Matmul 1: attention logits for BOTH point<->curve attentions at once.
    logits = jnp.dot(w_log, xb.astype(jnp.bfloat16),
                     preferred_element_type=jnp.float32)        # (Kn+Kl, TN)

    # Grouped softmax over the sublane axis: rows [0, kn) and [kn, Kn+Kl).
    m1 = jnp.max(logits[:kn, :], axis=0, keepdims=True)          # (1, TN)
    m2 = jnp.max(logits[kn:, :], axis=0, keepdims=True)          # (1, TN)
    rows = lax.broadcasted_iota(jnp.int32, (logits.shape[0], 1), 0)
    in_grp1 = rows < kn                                           # (Kn+Kl, 1)
    e = jnp.exp(logits - jnp.where(in_grp1, m1, m2))
    r1 = pl.reciprocal(jnp.sum(e[:kn, :], axis=0, keepdims=True), approx=True)
    r2 = pl.reciprocal(jnp.sum(e[kn:, :], axis=0, keepdims=True), approx=True)
    p = (e * jnp.where(in_grp1, r1, r2)).astype(jnp.bfloat16)     # (Kn+Kl, TN)

    # Matmul 2: folded convd on the stacked attention features (+ BN bias).
    d = jnp.dot(w_val, p, preferred_element_type=jnp.float32)     # (C, TN)
    y = xb + d + bd_ref[...]                                      # residual
    out_ref[0] = jnp.where(y >= 0.0, y, 0.2 * y).astype(out_ref.dtype)


# ----------------------------------------------------------------------------
# Tile selection: largest multiple of 128 dividing N that fits the VMEM budget.
# ----------------------------------------------------------------------------
def _pick_tile(n, c, kq, budget_bytes):
    if n % 128 != 0:
        return n  # full-length fallback for odd N (masked lane stores)
    per_point = (2 * 2 * c * 4          # x + out, double-buffered, f32
                 + (3 * kq + c) * 4     # logits / e / select temps / d (f32)
                 + (kq + c) * 2)        # bf16 copies of x-tile and p
    best, t = 128, 128
    while t <= n:
        if n % t == 0 and t * per_point <= budget_bytes:
            best = t
        t += 128
    return best


# ----------------------------------------------------------------------------
# Wrapper: tiny per-batch fold in XLA, heavy per-point work in Pallas.
# ----------------------------------------------------------------------------
@jax.jit
def curve_aggregation_forward(x, curves, params):
    """x: (B, C, N); curves: (B, C, curve_num, curve_length) -> (B, C, N)."""
    w_att, wa, wb, wc, wn, wl, wda, wdb, bd = params
    B, C, N = x.shape
    Kn, Kl = curves.shape[2], curves.shape[3]
    P = lax.Precision.HIGHEST

    # ---- per-batch curve descriptors + algebraic fold (tiny, stays in XLA) --
    att = jnp.einsum('bckl,c->bkl', curves, w_att, precision=P)
    sm_inter = jax.nn.softmax(att, axis=-1)
    sm_intra = jax.nn.softmax(att, axis=-2)
    curver_inter = jnp.einsum('bckl,bkl->bck', curves, sm_inter, precision=P)  # (B,C,Kn)
    curves_intra = jnp.einsum('bckl,bkl->bcl', curves, sm_intra, precision=P)  # (B,C,Kl)

    ma = jnp.dot(wa.T, wc, precision=P)                                # wa^T wc
    mb = jnp.dot(wb.T, wc, precision=P)                                # wb^T wc
    na = jnp.dot(jnp.dot(wda, wn, precision=P), wa, precision=P)       # wda wn wa
    nb = jnp.dot(jnp.dot(wdb, wl, precision=P), wb, precision=P)       # wdb wl wb

    w_log = jnp.concatenate(
        [jnp.einsum('bck,cd->bkd', curver_inter, ma, precision=P),
         jnp.einsum('bcl,cd->bld', curves_intra, mb, precision=P)],
        axis=1).astype(jnp.bfloat16)                                   # (B, Kn+Kl, C)
    w_val = jnp.concatenate(
        [jnp.einsum('dc,bck->bdk', na, curver_inter, precision=P),
         jnp.einsum('dc,bcl->bdl', nb, curves_intra, precision=P)],
        axis=2).astype(jnp.bfloat16)                                   # (B, C, Kn+Kl)

    # ---- Pallas hot loop: grid (B, N // TN), both axes "parallel" -----------
    Kq = Kn + Kl
    TN = _pick_tile(N, C, Kq, budget_bytes=16 * 1024 * 1024)

    cost = pl.CostEstimate(
        flops=2 * 2 * B * N * C * Kq,               # two matmuls
        transcendentals=B * N * Kq,                 # exp in the grouped softmax
        bytes_accessed=2 * B * C * N * 4 + 2 * B * Kq * C * 2 + C * 8,
    )

    return pl.pallas_call(
        functools.partial(_point_kernel, kn=Kn),
        out_shape=jax.ShapeDtypeStruct((B, C, N), x.dtype),
        grid=(B, N // TN),
        in_specs=[
            pl.BlockSpec((1, C, TN), lambda b, n: (b, 0, n)),
            pl.BlockSpec((1, Kq, C), lambda b, n: (b, 0, 0)),
            pl.BlockSpec((1, C, Kq), lambda b, n: (b, 0, 0)),
            pl.BlockSpec((C, 1), lambda b, n: (0, 0)),
        ],
        out_specs=pl.BlockSpec((1, C, TN), lambda b, n: (b, 0, n)),
        compiler_params=pltpu.CompilerParams(
            dimension_semantics=("parallel", "parallel"),
            vmem_limit_bytes=32 * 1024 * 1024,      # portable to v5e's 16 MiB default
        ),
        cost_estimate=cost,
    )(x, w_log, w_val, bd)


# ----------------------------------------------------------------------------
# Deterministic parameter construction (Conv k=1 weights, BN of convd folded)
# ----------------------------------------------------------------------------
def make_params(key, in_channel, eps=1e-5):
    C = in_channel
    mid = C // 2
    ks = jax.random.split(key, 11)

    def conv_w(k, cout, cin):
        bound = 1.0 / (cin ** 0.5)
        return jax.random.uniform(k, (cout, cin), jnp.float32, -bound, bound)

    w_att = conv_w(ks[0], 1, C)[0]          # line_conv_att: (C,)
    wa = conv_w(ks[1], mid, C)              # conva
    wb = conv_w(ks[2], mid, C)              # convb
    wc = conv_w(ks[3], mid, C)              # convc
    wn = conv_w(ks[4], mid, mid)            # convn
    wl = conv_w(ks[5], mid, mid)            # convl
    wd = conv_w(ks[6], C, 2 * mid)          # convd conv (bias=False)
    gamma = 1.0 + 0.1 * jax.random.normal(ks[7], (C,), jnp.float32)
    beta = 0.1 * jax.random.normal(ks[8], (C,), jnp.float32)
    mean = 0.1 * jax.random.normal(ks[9], (C,), jnp.float32)
    var = 0.5 + jax.random.uniform(ks[10], (C,), jnp.float32)
    scale = gamma / jnp.sqrt(var + eps)
    wd_f = wd * scale[:, None]
    bd_f = (beta - scale * mean)[:, None]   # (C, 1)
    return (w_att, wa, wb, wc, wn, wl, wd_f[:, :mid], wd_f[:, mid:], bd_f)


# ----------------------------------------------------------------------------
# Pure-JAX reference (mirrors the PyTorch forward with folded BN)
# ----------------------------------------------------------------------------
def reference(x, curves, params):
    w_att, wa, wb, wc, wn, wl, wda, wdb, bd = params
    P = lax.Precision.HIGHEST
    att = jnp.einsum('bckl,c->bkl', curves, w_att, precision=P)
    sm_inter = jax.nn.softmax(att, axis=-1)
    sm_intra = jax.nn.softmax(att, axis=-2)
    curver_inter = jnp.einsum('bckl,bkl->bck', curves, sm_inter, precision=P)
    curves_intra = jnp.einsum('bckl,bkl->bcl', curves, sm_intra, precision=P)
    a_inter = jnp.einsum('mc,bck->bmk', wa, curver_inter, precision=P)
    b_intra = jnp.einsum('mc,bcl->bml', wb, curves_intra, precision=P)
    x_logits = jnp.einsum('mc,bcn->bnm', wc, x, precision=P)
    p_inter = jax.nn.softmax(
        jnp.einsum('bnm,bmk->bnk', x_logits, a_inter, precision=P), axis=-1)
    p_intra = jax.nn.softmax(
        jnp.einsum('bnm,bml->bnl', x_logits, b_intra, precision=P), axis=-1)
    n_inter = jnp.einsum('mq,bqk->bmk', wn, a_inter, precision=P)
    l_intra = jnp.einsum('mq,bql->bml', wl, b_intra, precision=P)
    f_inter = jnp.einsum('bnk,bmk->bnm', p_inter, n_inter, precision=P)
    f_intra = jnp.einsum('bnl,bml->bnm', p_intra, l_intra, precision=P)
    d = (jnp.einsum('cm,bnm->bcn', wda, f_inter, precision=P)
         + jnp.einsum('cm,bnm->bcn', wdb, f_intra, precision=P)
         + bd[None, :, :])
    y = x + d
    return jnp.where(y >= 0, y, 0.2 * y)


if __name__ == "__main__":
    B, C, N = 2, 64, 1024      # in_channel=64 -> mid_feature=32
    Kn, Kl = 16, 32            # curve_num, curve_length

    key = jax.random.PRNGKey(0)
    kx, kc, kp = jax.random.split(key, 3)
    x = jax.random.normal(kx, (B, C, N), jnp.float32)
    curves = jax.random.normal(kc, (B, C, Kn, Kl), jnp.float32)
    params = make_params(kp, C)

    out = jax.block_until_ready(curve_aggregation_forward(x, curves, params))
    assert out.shape == (B, C, N), out.shape

    ref = reference(x, curves, params)
    if not jnp.allclose(out, ref, atol=3e-2, rtol=3e-2):
        err = float(jnp.max(jnp.abs(out - ref)))
        raise AssertionError(f"Pallas kernel mismatch vs reference (max abs err {err})")
    print("KERNEL_OK")
</pallas_src>

<mosaic_0001>
module attributes {stable_mosaic.version = 11 : i64} {
  func.func @_point_kernel(%arg0: i32, %arg1: i32, %arg2: memref<1x64x1024xf32, #tpu.memory_space<vmem>>, %arg3: memref<1x48x64xbf16, #tpu.memory_space<vmem>>, %arg4: memref<1x64x48xbf16, #tpu.memory_space<vmem>>, %arg5: memref<64x1xf32, #tpu.memory_space<vmem>>, %arg6: memref<1x64x1024xf32, #tpu.memory_space<vmem>>) attributes {dimension_semantics = [#tpu.dimension_semantics<parallel>, #tpu.dimension_semantics<parallel>], iteration_bounds = array<i64: 2, 1>, scalar_prefetch = 0 : i64, scratch_operands = 0 : i64, tpu.core_type = #tpu.core_type<tc>, window_params = [{transform_indices = @transform_0, window_bounds = array<i64: 1, 64, 1024>}, {transform_indices = @transform_1, window_bounds = array<i64: 1, 48, 64>}, {transform_indices = @transform_2, window_bounds = array<i64: 1, 64, 48>}, {pipeline_mode = #tpu.pipeline_mode<synchronous>, transform_indices = @transform_3, window_bounds = array<i64: 64, 1>}, {transform_indices = @transform_4, window_bounds = array<i64: 1, 64, 1024>}]} {
    %c0 = arith.constant 0 : index
    %c0_0 = arith.constant 0 : index
    %c0_1 = arith.constant 0 : index
    %0 = vector.load %arg2[%c0, %c0_0, %c0_1] : memref<1x64x1024xf32, #tpu.memory_space<vmem>>, vector<1x64x1024xf32>
    %1 = vector.shape_cast %0 : vector<1x64x1024xf32> to vector<64x1024xf32>
    %c0_2 = arith.constant 0 : index
    %c0_3 = arith.constant 0 : index
    %c0_4 = arith.constant 0 : index
    %2 = vector.load %arg3[%c0_2, %c0_3, %c0_4] : memref<1x48x64xbf16, #tpu.memory_space<vmem>>, vector<1x48x64xbf16>
    %3 = vector.shape_cast %2 : vector<1x48x64xbf16> to vector<48x64xbf16>
    %c0_5 = arith.constant 0 : index
    %c0_6 = arith.constant 0 : index
    %c0_7 = arith.constant 0 : index
    %4 = vector.load %arg4[%c0_5, %c0_6, %c0_7] : memref<1x64x48xbf16, #tpu.memory_space<vmem>>, vector<1x64x48xbf16>
    %5 = vector.shape_cast %4 : vector<1x64x48xbf16> to vector<64x48xbf16>
    %6 = arith.truncf %1 : vector<64x1024xf32> to vector<64x1024xbf16>
    %cst = arith.constant dense<0.000000e+00> : vector<48x1024xf32>
    %7 = tpu.matmul %3, %6, %cst {dimension_numbers = #tpu.dot_dimension_numbers<[1], [0], [0], [1], [0, 0, 1, 1], [], []>} : vector<48x64xbf16>, vector<64x1024xbf16>, vector<48x1024xf32> -> vector<48x1024xf32>
    %8 = vector.extract_strided_slice %7 {offsets = [0, 0], sizes = [16, 1024], strides = [1, 1]} : vector<48x1024xf32> to vector<16x1024xf32>
    %cst_8 = arith.constant dense<0xFF800000> : vector<1024xf32>
    %9 = vector.multi_reduction <maximumf>, %8, %cst_8 [0] : vector<16x1024xf32> to vector<1024xf32>
    %10 = vector.shape_cast %9 : vector<1024xf32> to vector<1x1024xf32>
    %11 = vector.extract_strided_slice %7 {offsets = [16, 0], sizes = [32, 1024], strides = [1, 1]} : vector<48x1024xf32> to vector<32x1024xf32>
    %cst_9 = arith.constant dense<0xFF800000> : vector<1024xf32>
    %12 = vector.multi_reduction <maximumf>, %11, %cst_9 [0] : vector<32x1024xf32> to vector<1024xf32>
    %13 = vector.shape_cast %12 : vector<1024xf32> to vector<1x1024xf32>
    %14 = tpu.iota {dimensions = array<i32: 0>} : vector<48x1xi32>
    %c16_i32 = arith.constant 16 : i32
    %15 = vector.broadcast %c16_i32 : i32 to vector<48x1xi32>
    %16 = arith.cmpi slt, %14, %15 : vector<48x1xi32>
    %17 = vector.shape_cast %16 : vector<48x1xi1> to vector<48x1xi1>
    %18 = vector.broadcast %17 : vector<48x1xi1> to vector<48x1024xi1>
    %19 = vector.shape_cast %10 : vector<1x1024xf32> to vector<1x1024xf32>
    %20 = vector.broadcast %19 : vector<1x1024xf32> to vector<48x1024xf32>
    %21 = vector.shape_cast %13 : vector<1x1024xf32> to vector<1x1024xf32>
    %22 = vector.broadcast %21 : vector<1x1024xf32> to vector<48x1024xf32>
    %23 = arith.select %18, %20, %22 : vector<48x1024xi1>, vector<48x1024xf32>
    %24 = arith.subf %7, %23 : vector<48x1024xf32>
    %25 = math.exp %24 : vector<48x1024xf32>
    %26 = vector.extract_strided_slice %25 {offsets = [0, 0], sizes = [16, 1024], strides = [1, 1]} : vector<48x1024xf32> to vector<16x1024xf32>
    %cst_10 = arith.constant dense<0.000000e+00> : vector<1024xf32>
    %27 = vector.multi_reduction <add>, %26, %cst_10 [0] : vector<16x1024xf32> to vector<1024xf32>
    %28 = vector.shape_cast %27 : vector<1024xf32> to vector<1x1024xf32>
    %29 = tpu.reciprocal %28 {approx = true} : vector<1x1024xf32> -> vector<1x1024xf32>
    %30 = vector.extract_strided_slice %25 {offsets = [16, 0], sizes = [32, 1024], strides = [1, 1]} : vector<48x1024xf32> to vector<32x1024xf32>
    %cst_11 = arith.constant dense<0.000000e+00> : vector<1024xf32>
    %31 = vector.multi_reduction <add>, %30, %cst_11 [0] : vector<32x1024xf32> to vector<1024xf32>
    %32 = vector.shape_cast %31 : vector<1024xf32> to vector<1x1024xf32>
    %33 = tpu.reciprocal %32 {approx = true} : vector<1x1024xf32> -> vector<1x1024xf32>
    %34 = vector.shape_cast %16 : vector<48x1xi1> to vector<48x1xi1>
    %35 = vector.broadcast %34 : vector<48x1xi1> to vector<48x1024xi1>
    %36 = vector.shape_cast %29 : vector<1x1024xf32> to vector<1x1024xf32>
    %37 = vector.broadcast %36 : vector<1x1024xf32> to vector<48x1024xf32>
    %38 = vector.shape_cast %33 : vector<1x1024xf32> to vector<1x1024xf32>
    %39 = vector.broadcast %38 : vector<1x1024xf32> to vector<48x1024xf32>
    %40 = arith.select %35, %37, %39 : vector<48x1024xi1>, vector<48x1024xf32>
    %41 = arith.mulf %25, %40 : vector<48x1024xf32>
    %42 = arith.truncf %41 : vector<48x1024xf32> to vector<48x1024xbf16>
    %cst_12 = arith.constant dense<0.000000e+00> : vector<64x1024xf32>
    %43 = tpu.matmul %5, %42, %cst_12 {dimension_numbers = #tpu.dot_dimension_numbers<[1], [0], [0], [1], [0, 0, 1, 1], [], []>} : vector<64x48xbf16>, vector<48x1024xbf16>, vector<64x1024xf32> -> vector<64x1024xf32>
    %44 = arith.addf %1, %43 : vector<64x1024xf32>
    %c0_13 = arith.constant 0 : index
    %c0_14 = arith.constant 0 : index
    %45 = vector.load %arg5[%c0_13, %c0_14] : memref<64x1xf32, #tpu.memory_space<vmem>>, vector<64x1xf32>
    %46 = vector.broadcast %45 : vector<64x1xf32> to vector<64x1024xf32>
    %47 = arith.addf %44, %46 : vector<64x1024xf32>
    %cst_15 = arith.constant 0.000000e+00 : f32
    %48 = vector.broadcast %cst_15 : f32 to vector<64x1024xf32>
    %49 = arith.cmpf oge, %47, %48 : vector<64x1024xf32>
    %cst_16 = arith.constant 2.000000e-01 : f32
    %50 = vector.broadcast %cst_16 : f32 to vector<64x1024xf32>
    %51 = arith.mulf %50, %47 : vector<64x1024xf32>
    %52 = arith.select %49, %47, %51 : vector<64x1024xi1>, vector<64x1024xf32>
    %c0_17 = arith.constant 0 : index
    %c0_18 = arith.constant 0 : index
    %c0_19 = arith.constant 0 : index
    %53 = vector.load %arg6[%c0_17, %c0_18, %c0_19] : memref<1x64x1024xf32, #tpu.memory_space<vmem>>, vector<1x64x1024xf32>
    %54 = vector.shape_cast %53 : vector<1x64x1024xf32> to vector<64x1024xf32>
    %55 = vector.shape_cast %52 : vector<64x1024xf32> to vector<1x64x1024xf32>
    tpu.vector_store %arg6[%c0_17, %c0_18, %c0_19], %55 {strides = array<i32>} : memref<1x64x1024xf32, #tpu.memory_space<vmem>>, vector<1x64x1024xf32>,
    return
  }
  func.func @transform_0(%arg0: i32, %arg1: i32) -> (i32, i32, i32) {
    %c0_i32 = arith.constant 0 : i32
    %c0_i32_0 = arith.constant 0 : i32
    return %arg0, %c0_i32, %arg1 : i32, i32, i32
  }
  func.func @transform_1(%arg0: i32, %arg1: i32) -> (i32, i32, i32) {
    %c0_i32 = arith.constant 0 : i32
    %c0_i32_0 = arith.constant 0 : i32
    %c0_i32_1 = arith.constant 0 : i32
    return %arg0, %c0_i32, %c0_i32_0 : i32, i32, i32
  }
  func.func @transform_2(%arg0: i32, %arg1: i32) -> (i32, i32, i32) {
    %c0_i32 = arith.constant 0 : i32
    %c0_i32_0 = arith.constant 0 : i32
    %c0_i32_1 = arith.constant 0 : i32
    return %arg0, %c0_i32, %c0_i32_0 : i32, i32, i32
  }
  func.func @transform_3(%arg0: i32, %arg1: i32) -> (i32, i32) {
    %c0_i32 = arith.constant 0 : i32
    %c0_i32_0 = arith.constant 0 : i32
    %c0_i32_1 = arith.constant 0 : i32
    return %c0_i32, %c0_i32_0 : i32, i32
  }
  func.func @transform_4(%arg0: i32, %arg1: i32) -> (i32, i32, i32) {
    %c0_i32 = arith.constant 0 : i32
    %c0_i32_0 = arith.constant 0 : i32
    return %arg0, %c0_i32, %arg1 : i32, i32, i32
  }
}

</mosaic_0001>

<llo_original>
// kernel: curve_aggregation_forward.1
$region0: #{curve_aggregation_forward.1}
  #allocation0 [shape = 'u32[]', space=smem, size = 0x4, offset = 0x4, fixed_abs, tag = 'smem constant byte address 0x4 - core index']
  #allocation1 [shape = 'u32[144,128]{1,0:T(1,128)}', space=vmem, size = 0x12000, scoped, tag = 'internal scratch']
  %s0 = inlined_call_operand.vmem [shape: f32[2,64,1024], index: 0, kind: input, shape index: {}]
  %s1 = inlined_call_operand.vmem [shape: bf16[2,48,64], index: 1, kind: input, shape index: {}]
  %s2 = inlined_call_operand.vmem [shape: bf16[2,64,48], index: 2, kind: input, shape index: {}]
  %s3 = inlined_call_operand.vmem [shape: f32[64,1], index: 3, kind: input, shape index: {}]
  %s4 = inlined_call_operand.hbm [shape: f32[2,64,1024], index: 4, kind: output, shape index: {}]
  %s5 = sld [smem:[#allocation0]]
  $region49: #{curve_aggregation_forward.1} parent=0
    _
  %s7 = ssub.s32 1, %s5
  %s8 = scalar_select 0, %s7, %s5
  $region1: #{curve_aggregation_forward.1} parent=0
    #allocation2 [shape = 'u8[524288]{0}', space=vmem, size = 0x80000, scoped, tag = 'output window, operand 0']
    #allocation3 [shape = 's32[2]{0}', space=sflag, size = 0x8, scoped, tag = 'scoped memory for curve_aggregation_forward.1']
    %9 = vsyncpa [#allocation3], 0
    %s10 = scalar_lea.sflag [#allocation3], 1
    %11 = vsyncpa %s10, 0
    loop: start=0, step=1, limit=4
    $region2: #{curve_aggregation_forward.1} parent=1 // loop_pre_header
      _
    $region3: #{curve_aggregation_forward.1} parent=1 // loop_header
      %s13 = sphi 0, %s17
      %p14 = scmp.ge.s32.totalorder %s13, 4
      %s20 = sphi 0, %s32
      %s21 = sphi 0, %s28
      %s22 = sphi 0, %s20
      %s23 = sphi 0, %s21
      %s24 = sphi 0, %s22
      %s25 = sphi 0, %s23
      %s37 = sphi 0, %s39
      %s40 = sphi 0, %s37
      %s41 = sphi 0, %s40
      %s57 = sphi 0, %s41
      %s63 = sphi 0, %s65
      %s66 = sphi 0, %s63
      %s67 = sphi 0, %s66
      %s83 = sphi 0, %s67
      %s89 = sphi 0, %s91
      %s92 = sphi 0, %s89
      %s93 = sphi 0, %s92
      %s109 = sphi 0, %s93
      %s113 = sphi 0, %s113
      %s115 = sphi 0, %s113
      %s116 = sphi 0, %s115
      %s130 = sphi 0, %s116
      %s138 = sphi 0, %s140
      %s141 = sphi 0, %s138
      %s142 = sphi 0, %s141
      %s158 = sphi 0, %s142
    $region4: #{curve_aggregation_forward.1} parent=1 // loop_header_branch
      %16 = sbr.rel (%p14) target = $region8
    $region5: #{curve_aggregation_forward.1} parent=1 // loop_body
      %s18 = ssub.s32 %s13, 1
      %s19 = ssub.s32 %s13, 2
      %s26 = sadd.s32 1, %s21
      %p27 = scmp.ge.s32.totalorder %s26, 1
      %s28 = scalar_select %p27, 0, %s26
      %s29 = sadd.s32 1, %s20
      %s30 = scalar_select %p27, %s29, %s20
      %p31 = scmp.ge.s32.totalorder %s30, 2
      %s32 = scalar_select %p31, 0, %s30
      %s33 = ssub.s32 %s20, %s32
      %s34 = ssub.s32 %s21, %s28
      %s35 = sor.u32 %s33, %s34
      %p36 = scmp.eq.s32.totalorder %s35, 0
      %s38 = sadd.s32 %s37, 1
      %s39 = scalar_select %p36, %s37, %s38
      %p42 = pneg %p36
      %p43 = scmp.eq.s32.totalorder %s13, 1
      %p44 = por %p42, %p43
      %p45 = scmp.ne.s32.totalorder %s37, %s40
      %p46 = scmp.eq.s32.totalorder %s13, 0
      %p47 = por %p45, %p46
      %p48 = scmp.ne.s32.totalorder %s37, %s40
      %p49 = scmp.eq.s32.totalorder %s18, 1
      %p50 = por %p48, %p49
      %p51 = scmp.ne.s32.totalorder %s40, %s41
      %p52 = scmp.eq.s32.totalorder %s18, 0
      %p53 = por %p51, %p52
      %p54 = scmp.ne.s32.totalorder %s40, %s41
      %p55 = scmp.eq.s32.totalorder %s19, 1
      %p56 = por %p54, %p55
      %p58 = scmp.ne.s32.totalorder %s41, %s57
      %p59 = scmp.eq.s32.totalorder %s19, 0
      %p60 = por %p58, %p59
      %s61 = ssub.s32 %s20, %s32
      %p62 = scmp.eq.s32.totalorder %s61, 0
      %s64 = sadd.s32 %s63, 1
      %s65 = scalar_select %p62, %s63, %s64
      %p68 = pneg %p62
      %p69 = scmp.eq.s32.totalorder %s13, 1
      %p70 = por %p68, %p69
      %p71 = scmp.ne.s32.totalorder %s63, %s66
      %p72 = scmp.eq.s32.totalorder %s13, 0
      %p73 = por %p71, %p72
      %p74 = scmp.ne.s32.totalorder %s63, %s66
      %p75 = scmp.eq.s32.totalorder %s18, 1
      %p76 = por %p74, %p75
      %p77 = scmp.ne.s32.totalorder %s66, %s67
      %p78 = scmp.eq.s32.totalorder %s18, 0
      %p79 = por %p77, %p78
      %p80 = scmp.ne.s32.totalorder %s66, %s67
      %p81 = scmp.eq.s32.totalorder %s19, 1
      %p82 = por %p80, %p81
      %p84 = scmp.ne.s32.totalorder %s67, %s83
      %p85 = scmp.eq.s32.totalorder %s19, 0
      %p86 = por %p84, %p85
      %s87 = ssub.s32 %s20, %s32
      %p88 = scmp.eq.s32.totalorder %s87, 0
      %s90 = sadd.s32 %s89, 1
      %s91 = scalar_select %p88, %s89, %s90
      %p94 = pneg %p88
      %p95 = scmp.eq.s32.totalorder %s13, 1
      %p96 = por %p94, %p95
      %p97 = scmp.ne.s32.totalorder %s89, %s92
      %p98 = scmp.eq.s32.totalorder %s13, 0
      %p99 = por %p97, %p98
      %p100 = scmp.ne.s32.totalorder %s89, %s92
      %p101 = scmp.eq.s32.totalorder %s18, 1
      %p102 = por %p100, %p101
      %p103 = scmp.ne.s32.totalorder %s92, %s93
      %p104 = scmp.eq.s32.totalorder %s18, 0
      %p105 = por %p103, %p104
      %p106 = scmp.ne.s32.totalorder %s92, %s93
      %p107 = scmp.eq.s32.totalorder %s19, 1
      %p108 = por %p106, %p107
      %p110 = scmp.ne.s32.totalorder %s93, %s109
      %p111 = scmp.eq.s32.totalorder %s19, 0
      %p112 = por %p110, %p111
      %s114 = sadd.s32 %s113, 1
      %p117 = scmp.eq.s32.totalorder %s13, 1
      %p118 = scmp.ne.s32.totalorder %s113, %s115
      %p119 = scmp.eq.s32.totalorder %s13, 0
      %p120 = por %p118, %p119
      %p121 = scmp.ne.s32.totalorder %s113, %s115
      %p122 = scmp.eq.s32.totalorder %s18, 1
      %p123 = por %p121, %p122
      %p124 = scmp.ne.s32.totalorder %s115, %s116
      %p125 = scmp.eq.s32.totalorder %s18, 0
      %p126 = por %p124, %p125
      %p127 = scmp.ne.s32.totalorder %s115, %s116
      %p128 = scmp.eq.s32.totalorder %s19, 1
      %p129 = por %p127, %p128
      %p131 = scmp.ne.s32.totalorder %s116, %s130
      %p132 = scmp.eq.s32.totalorder %s19, 0
      %p133 = por %p131, %p132
      %s134 = ssub.s32 %s20, %s32
      %s135 = ssub.s32 %s21, %s28
      %s136 = sor.u32 %s134, %s135
      %p137 = scmp.eq.s32.totalorder %s136, 0
      %s139 = sadd.s32 %s138, 1
      %s140 = scalar_select %p137, %s138, %s139
      %p143 = pneg %p137
      %p144 = scmp.eq.s32.totalorder %s13, 1
      %p145 = por %p143, %p144
      %p146 = scmp.ne.s32.totalorder %s138, %s141
      %p147 = scmp.eq.s32.totalorder %s13, 0
      %p148 = por %p146, %p147
      %p149 = scmp.ne.s32.totalorder %s138, %s141
      %p150 = scmp.eq.s32.totalorder %s18, 1
      %p151 = por %p149, %p150
      %p152 = scmp.ne.s32.totalorder %s141, %s142
      %p153 = scmp.eq.s32.totalorder %s18, 0
      %p154 = por %p152, %p153
      %p155 = scmp.ne.s32.totalorder %s141, %s142
      %p156 = scmp.eq.s32.totalorder %s19, 1
      %p157 = por %p155, %p156
      %p159 = scmp.ne.s32.totalorder %s142, %s158
      %p160 = scmp.eq.s32.totalorder %s19, 0
      %p161 = por %p159, %p160
      %p162 = scmp.le.s32.totalorder 1, %s13
      %p163 = scmp.lt.s32.totalorder %s13, 3
      %p164 = pnand %p162, %p163
      %p165 = pneg %p164
      // Predicated region
      $region9: #{curve_aggregation_forward.1} parent=5 // pred_check
        _
      $region10: #{curve_aggregation_forward.1} parent=5 // pred_check_branch
        %167 = sbr.rel (%p164) target = $region12
      $region11: #{curve_aggregation_forward.1} parent=5 // pred_region
        %s168 = ssub.s32 %s13, 1
        // Predicated region
        $region13: #{curve_aggregation_forward.1} parent=11 // pred_check
          %p169 = pneg %p126
        $region14: #{curve_aggregation_forward.1} parent=11 // pred_check_branch
          %171 = sbr.rel (%p169) target = $region16
        $region15: #{curve_aggregation_forward.1} parent=11 // pred_region
          _
        $region16: #{curve_aggregation_forward.1} parent=11 // pred_fallthru
          _
      $region12: #{curve_aggregation_forward.1} parent=5 // pred_fallthru
        _
      %p172 = scmp.lt.s32.totalorder %s13, 2
      // Predicated region
      $region17: #{curve_aggregation_forward.1} parent=5 // pred_check
        %p173 = pneg %p172
      $region18: #{curve_aggregation_forward.1} parent=5 // pred_check_branch
        %175 = sbr.rel (%p173) target = $region20
      $region19: #{curve_aggregation_forward.1} parent=5 // pred_region
        // Predicated region
        $region21: #{curve_aggregation_forward.1} parent=19 // pred_check
          %p176 = pneg %p47
        $region22: #{curve_aggregation_forward.1} parent=19 // pred_check_branch
          %178 = sbr.rel (%p176) target = $region24
        $region23: #{curve_aggregation_forward.1} parent=19 // pred_region
          %s179 = smul.u32 8, %s21
          %p180 = scmp.lt.s32.totalorder %s20, 1
          %s181 = scalar_select %p180, %s20, 1
          %p182 = scmp.lt.s32.totalorder %s179, 7
          %s183 = scalar_select %p182, %s179, 7
          %s184 = smul.addr %s181, 64
          %s185 = sadd.s32 %s183, %s184
          %s186 = smul.addr %s185, 8
          %s187 = scalar_lea.vmem %s0, %s186
          %s188 = smul.u32 8, %s21
        $region24: #{curve_aggregation_forward.1} parent=19 // pred_fallthru
          _
        // Predicated region
        $region25: #{curve_aggregation_forward.1} parent=19 // pred_check
          %p189 = pneg %p73
        $region26: #{curve_aggregation_forward.1} parent=19 // pred_check_branch
          %191 = sbr.rel (%p189) target = $region28
        $region27: #{curve_aggregation_forward.1} parent=19 // pred_region
          %p192 = scmp.lt.s32.totalorder %s20, 1
          %s193 = scalar_select %p192, %s20, 1
          %s194 = smul.addr %s193, 6
          %s195 = smul.addr %s194, 4
          %s196 = scalar_lea.vmem %s1, %s195
        $region28: #{curve_aggregation_forward.1} parent=19 // pred_fallthru
          _
        // Predicated region
        $region29: #{curve_aggregation_forward.1} parent=19 // pred_check
          %p197 = pneg %p99
        $region30: #{curve_aggregation_forward.1} parent=19 // pred_check_branch
          %199 = sbr.rel (%p197) target = $region32
        $region31: #{curve_aggregation_forward.1} parent=19 // pred_region
          %p200 = scmp.lt.s32.totalorder %s20, 1
          %s201 = scalar_select %p200, %s20, 1
          %s202 = smul.addr %s201, 8
          %s203 = smul.addr %s202, 4
          %s204 = scalar_lea.vmem %s2, %s203
        $region32: #{curve_aggregation_forward.1} parent=19 // pred_fallthru
          _
      $region20: #{curve_aggregation_forward.1} parent=5 // pred_fallthru
        _
      %p205 = scmp.le.s32.totalorder 1, %s13
      %p206 = scmp.lt.s32.totalorder %s13, 3
      %p207 = pnand %p205, %p206
      %p208 = pneg %p207
      // Predicated region
      $region33: #{curve_aggregation_forward.1} parent=5 // pred_check
        _
      $region34: #{curve_aggregation_forward.1} parent=5 // pred_check_branch
        %210 = sbr.rel (%p207) target = $region36
      $region35: #{curve_aggregation_forward.1} parent=5 // pred_region
        %s211 = ssub.s32 %s13, 1
        %s212 = smul.u32 8, %s23
        %p213 = scmp.lt.s32.totalorder %s22, 1
        %s214 = scalar_select %p213, %s22, 1
        %p215 = scmp.lt.s32.totalorder %s212, 7
        %s216 = scalar_select %p215, %s212, 7
        %s217 = smul.addr %s214, 64
        %s218 = sadd.s32 %s216, %s217
        %s219 = smul.addr %s218, 8
        %s220 = scalar_lea.vmem %s0, %s219
        %p221 = pneg %p53
        %p222 = pneg %p50
        %p223 = scmp.lt.s32.totalorder %s22, 1
        %s224 = scalar_select %p223, %s22, 1
        %s225 = smul.addr %s224, 6
        %s226 = smul.addr %s225, 4
        %s227 = scalar_lea.vmem %s1, %s226
        %p228 = pneg %p79
        %p229 = pneg %p76
        %p230 = scmp.lt.s32.totalorder %s22, 1
        %s231 = scalar_select %p230, %s22, 1
        %s232 = smul.addr %s231, 8
        %s233 = smul.addr %s232, 4
        %s234 = scalar_lea.vmem %s2, %s233
        %p235 = pneg %p105
        %p236 = pneg %p102
        %p237 = pneg %p126
        %p238 = pneg %p123
        %p239 = pneg %p154
        %p240 = pneg %p151
        %s241 = sand.u32 %s141, 1
        %s242 = scalar_lea.sflag [#allocation3], %s241
        %s243 = sand.u32 %s141, 1
        %s244 = smul.addr %s243, 512
        %s245 = scalar_lea.vmem [#allocation2], %s244
        %s246 = smul.u32 8, %s23
        %p247 = scmp.lt.s32.totalorder %s22, 1
        %s248 = scalar_select %p247, %s22, 1
        %p249 = scmp.lt.s32.totalorder %s246, 7
        %s250 = scalar_select %p249, %s246, 7
        %s251 = smul.addr %s248, 64
        %s252 = sadd.s32 %s250, %s251
        %s253 = smul.addr %s252, 8
        %s254 = scalar_lea.vmem %s0, %s253
        %s255 = smul.u32 8, %s23
        %p256 = scmp.lt.s32.totalorder %s22, 1
        %s257 = scalar_select %p256, %s22, 1
        %s258 = smul.addr %s257, 6
        %s259 = smul.addr %s258, 4
        %s260 = scalar_lea.vmem %s1, %s259
        %p261 = scmp.lt.s32.totalorder %s22, 1
        %s262 = scalar_select %p261, %s22, 1
        %s263 = smul.addr %s262, 8
        %s264 = smul.addr %s263, 4
        %s265 = scalar_lea.vmem %s2, %s264
        %s266 = smul.u32 8, %s23
        %v268 = vld [vmem:[%s254] sm:$0xff]
        %v269 = vld [vmem:[%s254 + $0x8] sm:$0xff]
        %v270 = vld [vmem:[%s254 + $0x10] sm:$0xff]
        %v271 = vld [vmem:[%s254 + $0x18] sm:$0xff]
        %v272 = vld [vmem:[%s254 + $0x20] sm:$0xff]
        %v273 = vld [vmem:[%s254 + $0x28] sm:$0xff]
        %v274 = vld [vmem:[%s254 + $0x30] sm:$0xff]
        %v275 = vld [vmem:[%s254 + $0x38] sm:$0xff]
        %v276 = vld [vmem:[%s254 + $0x40] sm:$0xff]
        %v277 = vld [vmem:[%s254 + $0x48] sm:$0xff]
        %v278 = vld [vmem:[%s254 + $0x50] sm:$0xff]
        %v279 = vld [vmem:[%s254 + $0x58] sm:$0xff]
        %v280 = vld [vmem:[%s254 + $0x60] sm:$0xff]
        %v281 = vld [vmem:[%s254 + $0x68] sm:$0xff]
        %v282 = vld [vmem:[%s254 + $0x70] sm:$0xff]
        %v283 = vld [vmem:[%s254 + $0x78] sm:$0xff]
        %v284 = vld [vmem:[%s254 + $0x80] sm:$0xff]
        %v285 = vld [vmem:[%s254 + $0x88] sm:$0xff]
        %v286 = vld [vmem:[%s254 + $0x90] sm:$0xff]
        %v287 = vld [vmem:[%s254 + $0x98] sm:$0xff]
        %v288 = vld [vmem:[%s254 + $0xa0] sm:$0xff]
        %v289 = vld [vmem:[%s254 + $0xa8] sm:$0xff]
        %v290 = vld [vmem:[%s254 + $0xb0] sm:$0xff]
        %v291 = vld [vmem:[%s254 + $0xb8] sm:$0xff]
        %v292 = vld [vmem:[%s254 + $0xc0] sm:$0xff]
        %v293 = vld [vmem:[%s254 + $0xc8] sm:$0xff]
        %v294 = vld [vmem:[%s254 + $0xd0] sm:$0xff]
        %v295 = vld [vmem:[%s254 + $0xd8] sm:$0xff]
        %v296 = vld [vmem:[%s254 + $0xe0] sm:$0xff]
        %v297 = vld [vmem:[%s254 + $0xe8] sm:$0xff]
        %v298 = vld [vmem:[%s254 + $0xf0] sm:$0xff]
        %v299 = vld [vmem:[%s254 + $0xf8] sm:$0xff]
        %v300 = vld [vmem:[%s254 + $0x100] sm:$0xff]
        %v301 = vld [vmem:[%s254 + $0x108] sm:$0xff]
        %v302 = vld [vmem:[%s254 + $0x110] sm:$0xff]
        %v303 = vld [vmem:[%s254 + $0x118] sm:$0xff]
        %v304 = vld [vmem:[%s254 + $0x120] sm:$0xff]
        %v305 = vld [vmem:[%s254 + $0x128] sm:$0xff]
        %v306 = vld [vmem:[%s254 + $0x130] sm:$0xff]
        %v307 = vld [vmem:[%s254 + $0x138] sm:$0xff]
        %v308 = vld [vmem:[%s254 + $0x140] sm:$0xff]
        %v309 = vld [vmem:[%s254 + $0x148] sm:$0xff]
        %v310 = vld [vmem:[%s254 + $0x150] sm:$0xff]
        %v311 = vld [vmem:[%s254 + $0x158] sm:$0xff]
        %v312 = vld [vmem:[%s254 + $0x160] sm:$0xff]
        %v313 = vld [vmem:[%s254 + $0x168] sm:$0xff]
        %v314 = vld [vmem:[%s254 + $0x170] sm:$0xff]
        %v315 = vld [vmem:[%s254 + $0x178] sm:$0xff]
        %v316 = vld [vmem:[%s254 + $0x180] sm:$0xff]
        %v317 = vld [vmem:[%s254 + $0x188] sm:$0xff]
        %v318 = vld [vmem:[%s254 + $0x190] sm:$0xff]
        %v319 = vld [vmem:[%s254 + $0x198] sm:$0xff]
        %v320 = vld [vmem:[%s254 + $0x1a0] sm:$0xff]
        %v321 = vld [vmem:[%s254 + $0x1a8] sm:$0xff]
        %v322 = vld [vmem:[%s254 + $0x1b0] sm:$0xff]
        %v323 = vld [vmem:[%s254 + $0x1b8] sm:$0xff]
        %v324 = vld [vmem:[%s254 + $0x1c0] sm:$0xff]
        %v325 = vld [vmem:[%s254 + $0x1c8] sm:$0xff]
        %v326 = vld [vmem:[%s254 + $0x1d0] sm:$0xff]
        %v327 = vld [vmem:[%s254 + $0x1d8] sm:$0xff]
        %v328 = vld [vmem:[%s254 + $0x1e0] sm:$0xff]
        %v329 = vld [vmem:[%s254 + $0x1e8] sm:$0xff]
        %v330 = vld [vmem:[%s254 + $0x1f0] sm:$0xff]
        %v331 = vld [vmem:[%s254 + $0x1f8] sm:$0xff]
        %v332 = vld [vmem:[%s260] sm:$0xf]
        %v333 = vld [vmem:[%s260 + $0x4] sm:$0xf]
        %v334 = vld [vmem:[%s260 + $0x8] sm:$0xf]
        %v335 = vld [vmem:[%s260 + $0xc] sm:$0xf]
        %v336 = vld [vmem:[%s260 + $0x10] sm:$0xf]
        %v337 = vld [vmem:[%s260 + $0x14] sm:$0xf]
        %v338 = vld [vmem:[%s265] sm:$0xf]
        %v339 = vld [vmem:[%s265 + $0x4] sm:$0xf]
        %v340 = vld [vmem:[%s265 + $0x8] sm:$0xf]
        %v341 = vld [vmem:[%s265 + $0xc] sm:$0xf]
        %v342 = vld [vmem:[%s265 + $0x10] sm:$0xf]
        %v343 = vld [vmem:[%s265 + $0x14] sm:$0xf]
        %v344 = vld [vmem:[%s265 + $0x18] sm:$0xf]
        %v345 = vld [vmem:[%s265 + $0x1c] sm:$0xf]
        %v346 = vpack.c.bf16 %v276, %v268
        %v347 = vpack.c.bf16 %v277, %v269
        %v348 = vpack.c.bf16 %v278, %v270
        %v349 = vpack.c.bf16 %v279, %v271
        %v350 = vpack.c.bf16 %v280, %v272
        %v351 = vpack.c.bf16 %v281, %v273
        %v352 = vpack.c.bf16 %v282, %v274
        %v353 = vpack.c.bf16 %v283, %v275
        %v354 = vpack.c.bf16 %v292, %v284
        %v355 = vpack.c.bf16 %v293, %v285
        %v356 = vpack.c.bf16 %v294, %v286
        %v357 = vpack.c.bf16 %v295, %v287
        %v358 = vpack.c.bf16 %v296, %v288
        %v359 = vpack.c.bf16 %v297, %v289
        %v360 = vpack.c.bf16 %v298, %v290
        %v361 = vpack.c.bf16 %v299, %v291
        %v362 = vpack.c.bf16 %v308, %v300
        %v363 = vpack.c.bf16 %v309, %v301
        %v364 = vpack.c.bf16 %v310, %v302
        %v365 = vpack.c.bf16 %v311, %v303
        %v366 = vpack.c.bf16 %v312, %v304
        %v367 = vpack.c.bf16 %v313, %v305
        %v368 = vpack.c.bf16 %v314, %v306
        %v369 = vpack.c.bf16 %v315, %v307
        %v370 = vpack.c.bf16 %v324, %v316
        %v371 = vpack.c.bf16 %v325, %v317
        %v372 = vpack.c.bf16 %v326, %v318
        %v373 = vpack.c.bf16 %v327, %v319
        %v374 = vpack.c.bf16 %v328, %v320
        %v375 = vpack.c.bf16 %v329, %v321
        %v376 = vpack.c.bf16 %v330, %v322
        %v377 = vpack.c.bf16 %v331, %v323
        %v384 = vunpack.c.l.b16 %v332
        %v385 = vunpack.c.l.b16 %v333
        %v386 = vunpack.c.l.b16 %v334
        %v387 = vunpack.c.l.b16 %v335
        %v388 = vunpack.c.l.b16 %v336
        %v389 = vunpack.c.l.b16 %v337
        %v390 = vpack.c.b16 %v385, %v384
        %v391 = vpack.c.b16 %v387, %v386
        %v392 = vpack.c.b16 %v389, %v388
        %vm393 = vcmask 523264
        %v395 = vsel %vm393, %v390, 0
        %v398 = vsel %vm393, %v391, 0
        %v401 = vsel %vm393, %v392, 0
        %403 = vmatprep.subr.bf16.mxu0 %v347
        %404 = vmatpush1.bf16.msra.mxu0 %v346
        %405 = vmatprep.subr.bf16.mxu0 %v355
        %406 = vmatpush1.bf16.msra.mxu0 %v354
        %407 = vmatprep.subr.bf16.mxu0 %v363
        %408 = vmatpush1.bf16.msra.mxu0 %v362
        %409 = vmatprep.subr.bf16.mxu0 %v371
        %410 = vmatpush1.bf16.msra.mxu0 %v370
        %411 = vmatprep.subr.bf16.mxu0 0
        %412 = vmatpush1.bf16.msra.mxu0 0
        %413 = vmatprep.subr.bf16.mxu0 0
        %414 = vmatpush1.bf16.msra.mxu0 0
        %415 = vmatprep.subr.bf16.mxu0 0
        %416 = vmatpush1.bf16.msra.mxu0 0
        %417 = vmatprep.subr.bf16.mxu0 0
        %418 = vmatpush1.bf16.msra.mxu0 0
        %419 = vmatprep.subr.bf16.mxu0 0
        %420 = vmatpush1.bf16.msra.mxu0 0
        %421 = vmatprep.subr.bf16.mxu0 0
        %422 = vmatpush1.bf16.msra.mxu0 0
        %423 = vmatprep.subr.bf16.mxu0 0
        %424 = vmatpush1.bf16.msra.mxu0 0
        %425 = vmatprep.subr.bf16.mxu0 0
        %426 = vmatpush1.bf16.msra.mxu0 0
        %427 = vmatprep.subr.bf16.mxu0 0
        %428 = vmatpush1.bf16.msra.mxu0 0
        %429 = vmatprep.subr.bf16.mxu0 0
        %430 = vmatpush1.bf16.msra.mxu0 0
        %431 = vmatprep.subr.bf16.mxu0 0
        %432 = vmatpush1.bf16.msra.mxu0 0
        %433 = vmatprep.subr.bf16.mxu0 0
        %434 = vmatpush1.bf16.msra.mxu0 0
        %435 = vmatprep.mubr.bf16.mxu0 0
        %436 = vmatmul.mubr.bf16.gmra.mrb[0].mxu0 %v395
        %v437 = vpop.f32.mrb[0].mxu0
        %v438 = vadd.f32 0.0, %v437
        %v439 = vpop.f32.mrb[0].mxu0
        %v440 = vadd.f32 0.0, %v439
        %v441 = vpop.f32.mrb[0].mxu0
        %v442 = vadd.f32 0.0, %v441
        %v443 = vpop.f32.mrb[0].mxu0
        %v444 = vadd.f32 0.0, %v443
        %445 = vmatprep.mubr.bf16.mxu0 0
        %446 = vmatmul.mubr.bf16.gmra.mrb[0].mxu0 %v398
        %v447 = vpop.f32.mrb[0].mxu0
        %v448 = vadd.f32 0.0, %v447
        %v449 = vpop.f32.mrb[0].mxu0
        %v450 = vadd.f32 0.0, %v449
        %v451 = vpop.f32.mrb[0].mxu0
        %v452 = vadd.f32 0.0, %v451
        %v453 = vpop.f32.mrb[0].mxu0
        %v454 = vadd.f32 0.0, %v453
        %455 = vmatprep.mubr.bf16.mxu0 0
        %456 = vmatmul.mubr.bf16.gmra.mrb[0].mxu0 %v401
        %v457 = vpop.f32.mrb[0].mxu0
        %v458 = vadd.f32 0.0, %v457
        %v459 = vpop.f32.mrb[0].mxu0
        %v460 = vadd.f32 0.0, %v459
        %v461 = vpop.f32.mrb[0].mxu0
        %v462 = vadd.f32 0.0, %v461
        %v463 = vpop.f32.mrb[0].mxu0
        %v464 = vadd.f32 0.0, %v463
        %465 = vdwg.mxu0
        %466 = vmatprep.subr.bf16.mxu0 %v349
        %467 = vmatpush1.bf16.msra.mxu0 %v348
        %468 = vmatprep.subr.bf16.mxu0 %v357
        %469 = vmatpush1.bf16.msra.mxu0 %v356
        %470 = vmatprep.subr.bf16.mxu0 %v365
        %471 = vmatpush1.bf16.msra.mxu0 %v364
        %472 = vmatprep.subr.bf16.mxu0 %v373
        %473 = vmatpush1.bf16.msra.mxu0 %v372
        %474 = vmatprep.subr.bf16.mxu0 0
        %475 = vmatpush1.bf16.msra.mxu0 0
        %476 = vmatprep.subr.bf16.mxu0 0
        %477 = vmatpush1.bf16.msra.mxu0 0
        %478 = vmatprep.subr.bf16.mxu0 0
        %479 = vmatpush1.bf16.msra.mxu0 0
        %480 = vmatprep.subr.bf16.mxu0 0
        %481 = vmatpush1.bf16.msra.mxu0 0
        %482 = vmatprep.subr.bf16.mxu0 0
        %483 = vmatpush1.bf16.msra.mxu0 0
        %484 = vmatprep.subr.bf16.mxu0 0
        %485 = vmatpush1.bf16.msra.mxu0 0
        %486 = vmatprep.subr.bf16.mxu0 0
        %487 = vmatpush1.bf16.msra.mxu0 0
        %488 = vmatprep.subr.bf16.mxu0 0
        %489 = vmatpush1.bf16.msra.mxu0 0
        %490 = vmatprep.subr.bf16.mxu0 0
        %491 = vmatpush1.bf16.msra.mxu0 0
        %492 = vmatprep.subr.bf16.mxu0 0
        %493 = vmatpush1.bf16.msra.mxu0 0
        %494 = vmatprep.subr.bf16.mxu0 0
        %495 = vmatpush1.bf16.msra.mxu0 0
        %496 = vmatprep.subr.bf16.mxu0 0
        %497 = vmatpush1.bf16.msra.mxu0 0
        %498 = vmatprep.mubr.bf16.mxu0 0
        %499 = vmatmul.mubr.bf16.gmra.mrb[0].mxu0 %v395
        %v500 = vpop.f32.mrb[0].mxu0
        %v501 = vadd.f32 0.0, %v500
        %v502 = vpop.f32.mrb[0].mxu0
        %v503 = vadd.f32 0.0, %v502
        %v504 = vpop.f32.mrb[0].mxu0
        %v505 = vadd.f32 0.0, %v504
        %v506 = vpop.f32.mrb[0].mxu0
        %v507 = vadd.f32 0.0, %v506
        %508 = vmatprep.mubr.bf16.mxu0 0
        %509 = vmatmul.mubr.bf16.gmra.mrb[0].mxu0 %v398
        %v510 = vpop.f32.mrb[0].mxu0
        %v511 = vadd.f32 0.0, %v510
        %v512 = vpop.f32.mrb[0].mxu0
        %v513 = vadd.f32 0.0, %v512
        %v514 = vpop.f32.mrb[0].mxu0
        %v515 = vadd.f32 0.0, %v514
        %v516 = vpop.f32.mrb[0].mxu0
        %v517 = vadd.f32 0.0, %v516
        %518 = vmatprep.mubr.bf16.mxu0 0
        %519 = vmatmul.mubr.bf16.gmra.mrb[0].mxu0 %v401
        %v520 = vpop.f32.mrb[0].mxu0
        %v521 = vadd.f32 0.0, %v520
        %v522 = vpop.f32.mrb[0].mxu0
        %v523 = vadd.f32 0.0, %v522
        %v524 = vpop.f32.mrb[0].mxu0
        %v525 = vadd.f32 0.0, %v524
        %v526 = vpop.f32.mrb[0].mxu0
        %v527 = vadd.f32 0.0, %v526
        %528 = vdwg.mxu0
        %529 = vmatprep.subr.bf16.mxu0 %v351
        %530 = vmatpush1.bf16.msra.mxu0 %v350
        %531 = vmatprep.subr.bf16.mxu0 %v359
        %532 = vmatpush1.bf16.msra.mxu0 %v358
        %533 = vmatprep.subr.bf16.mxu0 %v367
        %534 = vmatpush1.bf16.msra.mxu0 %v366
        %535 = vmatprep.subr.bf16.mxu0 %v375
        %536 = vmatpush1.bf16.msra.mxu0 %v374
        %537 = vmatprep.subr.bf16.mxu0 0
        %538 = vmatpush1.bf16.msra.mxu0 0
        %539 = vmatprep.subr.bf16.mxu0 0
        %540 = vmatpush1.bf16.msra.mxu0 0
        %541 = vmatprep.subr.bf16.mxu0 0
        %542 = vmatpush1.bf16.msra.mxu0 0
        %543 = vmatprep.subr.bf16.mxu0 0
        %544 = vmatpush1.bf16.msra.mxu0 0
        %545 = vmatprep.subr.bf16.mxu0 0
        %546 = vmatpush1.bf16.msra.mxu0 0
        %547 = vmatprep.subr.bf16.mxu0 0
        %548 = vmatpush1.bf16.msra.mxu0 0
        %549 = vmatprep.subr.bf16.mxu0 0
        %550 = vmatpush1.bf16.msra.mxu0 0
        %551 = vmatprep.subr.bf16.mxu0 0
        %552 = vmatpush1.bf16.msra.mxu0 0
        %553 = vmatprep.subr.bf16.mxu0 0
        %554 = vmatpush1.bf16.msra.mxu0 0
        %555 = vmatprep.subr.bf16.mxu0 0
        %556 = vmatpush1.bf16.msra.mxu0 0
        %557 = vmatprep.subr.bf16.mxu0 0
        %558 = vmatpush1.bf16.msra.mxu0 0
        %559 = vmatprep.subr.bf16.mxu0 0
        %560 = vmatpush1.bf16.msra.mxu0 0
        %561 = vmatprep.mubr.bf16.mxu0 0
        %562 = vmatmul.mubr.bf16.gmra.mrb[0].mxu0 %v395
        %v563 = vpop.f32.mrb[0].mxu0
        %v564 = vadd.f32 0.0, %v563
        %v565 = vpop.f32.mrb[0].mxu0
        %v566 = vadd.f32 0.0, %v565
        %v567 = vpop.f32.mrb[0].mxu0
        %v568 = vadd.f32 0.0, %v567
        %v569 = vpop.f32.mrb[0].mxu0
        %v570 = vadd.f32 0.0, %v569
        %571 = vmatprep.mubr.bf16.mxu0 0
        %572 = vmatmul.mubr.bf16.gmra.mrb[0].mxu0 %v398
        %v573 = vpop.f32.mrb[0].mxu0
        %v574 = vadd.f32 0.0, %v573
        %v575 = vpop.f32.mrb[0].mxu0
        %v576 = vadd.f32 0.0, %v575
        %v577 = vpop.f32.mrb[0].mxu0
        %v578 = vadd.f32 0.0, %v577
        %v579 = vpop.f32.mrb[0].mxu0
        %v580 = vadd.f32 0.0, %v579
        %581 = vmatprep.mubr.bf16.mxu0 0
        %582 = vmatmul.mubr.bf16.gmra.mrb[0].mxu0 %v401
        %v583 = vpop.f32.mrb[0].mxu0
        %v584 = vadd.f32 0.0, %v583
        %v585 = vpop.f32.mrb[0].mxu0
        %v586 = vadd.f32 0.0, %v585
        %v587 = vpop.f32.mrb[0].mxu0
        %v588 = vadd.f32 0.0, %v587
        %v589 = vpop.f32.mrb[0].mxu0
        %v590 = vadd.f32 0.0, %v589
        %591 = vdwg.mxu0
        %592 = vmatprep.subr.bf16.mxu0 %v353
        %593 = vmatpush1.bf16.msra.mxu0 %v352
        %594 = vmatprep.subr.bf16.mxu0 %v361
        %595 = vmatpush1.bf16.msra.mxu0 %v360
        %596 = vmatprep.subr.bf16.mxu0 %v369
        %597 = vmatpush1.bf16.msra.mxu0 %v368
        %598 = vmatprep.subr.bf16.mxu0 %v377
        %599 = vmatpush1.bf16.msra.mxu0 %v376
        %600 = vmatprep.subr.bf16.mxu0 0
        %601 = vmatpush1.bf16.msra.mxu0 0
        %602 = vmatprep.subr.bf16.mxu0 0
        %603 = vmatpush1.bf16.msra.mxu0 0
        %604 = vmatprep.subr.bf16.mxu0 0
        %605 = vmatpush1.bf16.msra.mxu0 0
        %606 = vmatprep.subr.bf16.mxu0 0
        %607 = vmatpush1.bf16.msra.mxu0 0
        %608 = vmatprep.subr.bf16.mxu0 0
        %609 = vmatpush1.bf16.msra.mxu0 0
        %610 = vmatprep.subr.bf16.mxu0 0
        %611 = vmatpush1.bf16.msra.mxu0 0
        %612 = vmatprep.subr.bf16.mxu0 0
        %613 = vmatpush1.bf16.msra.mxu0 0
        %614 = vmatprep.subr.bf16.mxu0 0
        %615 = vmatpush1.bf16.msra.mxu0 0
        %616 = vmatprep.subr.bf16.mxu0 0
        %617 = vmatpush1.bf16.msra.mxu0 0
        %618 = vmatprep.subr.bf16.mxu0 0
        %619 = vmatpush1.bf16.msra.mxu0 0
        %620 = vmatprep.subr.bf16.mxu0 0
        %621 = vmatpush1.bf16.msra.mxu0 0
        %622 = vmatprep.subr.bf16.mxu0 0
        %623 = vmatpush1.bf16.msra.mxu0 0
        %624 = vmatprep.mubr.bf16.mxu0 0
        %625 = vmatmul.mubr.bf16.gmra.mrb[0].mxu0 %v395
        %v626 = vpop.f32.mrb[0].mxu0
        %v627 = vadd.f32 0.0, %v626
        %v628 = vpop.f32.mrb[0].mxu0
        %v629 = vadd.f32 0.0, %v628
        %v630 = vpop.f32.mrb[0].mxu0
        %v631 = vadd.f32 0.0, %v630
        %v632 = vpop.f32.mrb[0].mxu0
        %v633 = vadd.f32 0.0, %v632
        %634 = vmatprep.mubr.bf16.mxu0 0
        %635 = vmatmul.mubr.bf16.gmra.mrb[0].mxu0 %v398
        %v636 = vpop.f32.mrb[0].mxu0
        %v637 = vadd.f32 0.0, %v636
        %v638 = vpop.f32.mrb[0].mxu0
        %v639 = vadd.f32 0.0, %v638
        %v640 = vpop.f32.mrb[0].mxu0
        %v641 = vadd.f32 0.0, %v640
        %v642 = vpop.f32.mrb[0].mxu0
        %v643 = vadd.f32 0.0, %v642
        %644 = vmatprep.mubr.bf16.mxu0 0
        %645 = vmatmul.mubr.bf16.gmra.mrb[0].mxu0 %v401
        %v646 = vpop.f32.mrb[0].mxu0
        %v647 = vadd.f32 0.0, %v646
        %v648 = vpop.f32.mrb[0].mxu0
        %v649 = vadd.f32 0.0, %v648
        %v650 = vpop.f32.mrb[0].mxu0
        %v651 = vadd.f32 0.0, %v650
        %v652 = vpop.f32.mrb[0].mxu0
        %v653 = vadd.f32 0.0, %v652
        %654 = vdwg.mxu0
        %v655 = vmax.f32 %v438, %v442
        %v656 = vrot.slane %v655, 4
        %v657 = vmax.f32 %v655, %v656
        %v658 = vrot.slane %v657, 2
        %v659 = vmax.f32 %v657, %v658
        %v660 = vrot.slane %v659, 1
        %v661 = vmax.f32 %v659, %v660
        %v662 = vmax.f32 %v440, %v444
        %v663 = vrot.slane %v662, 4
        %v664 = vmax.f32 %v662, %v663
        %v665 = vrot.slane %v664, 2
        %v666 = vmax.f32 %v664, %v665
        %v667 = vrot.slane %v666, 1
        %v668 = vmax.f32 %v666, %v667
        %v669 = vmax.f32 %v501, %v505
        %v670 = vrot.slane %v669, 4
        %v671 = vmax.f32 %v669, %v670
        %v672 = vrot.slane %v671, 2
        %v673 = vmax.f32 %v671, %v672
        %v674 = vrot.slane %v673, 1
        %v675 = vmax.f32 %v673, %v674
        %v676 = vmax.f32 %v503, %v507
        %v677 = vrot.slane %v676, 4
        %v678 = vmax.f32 %v676, %v677
        %v679 = vrot.slane %v678, 2
        %v680 = vmax.f32 %v678, %v679
        %v681 = vrot.slane %v680, 1
        %v682 = vmax.f32 %v680, %v681
        %v683 = vmax.f32 %v564, %v568
        %v684 = vrot.slane %v683, 4
        %v685 = vmax.f32 %v683, %v684
        %v686 = vrot.slane %v685, 2
        %v687 = vmax.f32 %v685, %v686
        %v688 = vrot.slane %v687, 1
        %v689 = vmax.f32 %v687, %v688
        %v690 = vmax.f32 %v566, %v570
        %v691 = vrot.slane %v690, 4
        %v692 = vmax.f32 %v690, %v691
        %v693 = vrot.slane %v692, 2
        %v694 = vmax.f32 %v692, %v693
        %v695 = vrot.slane %v694, 1
        %v696 = vmax.f32 %v694, %v695
        %v697 = vmax.f32 %v627, %v631
        %v698 = vrot.slane %v697, 4
        %v699 = vmax.f32 %v697, %v698
        %v700 = vrot.slane %v699, 2
        %v701 = vmax.f32 %v699, %v700
        %v702 = vrot.slane %v701, 1
        %v703 = vmax.f32 %v701, %v702
        %v704 = vmax.f32 %v629, %v633
        %v705 = vrot.slane %v704, 4
        %v706 = vmax.f32 %v704, %v705
        %v707 = vrot.slane %v706, 2
        %v708 = vmax.f32 %v706, %v707
        %v709 = vrot.slane %v708, 1
        %v710 = vmax.f32 %v708, %v709
        %v711 = vmax.f32 %v448, %v452
        %v712 = vmax.f32 %v711, %v458
        %v713 = vmax.f32 %v712, %v462
        %v714 = vrot.slane %v713, 4
        %v715 = vmax.f32 %v713, %v714
        %v716 = vrot.slane %v715, 2
        %v717 = vmax.f32 %v715, %v716
        %v718 = vrot.slane %v717, 1
        %v719 = vmax.f32 %v717, %v718
        %v720 = vmax.f32 %v450, %v454
        %v721 = vmax.f32 %v720, %v460
        %v722 = vmax.f32 %v721, %v464
        %v723 = vrot.slane %v722, 4
        %v724 = vmax.f32 %v722, %v723
        %v725 = vrot.slane %v724, 2
        %v726 = vmax.f32 %v724, %v725
        %v727 = vrot.slane %v726, 1
        %v728 = vmax.f32 %v726, %v727
        %v729 = vmax.f32 %v511, %v515
        %v730 = vmax.f32 %v729, %v521
        %v731 = vmax.f32 %v730, %v525
        %v732 = vrot.slane %v731, 4
        %v733 = vmax.f32 %v731, %v732
        %v734 = vrot.slane %v733, 2
        %v735 = vmax.f32 %v733, %v734
        %v736 = vrot.slane %v735, 1
        %v737 = vmax.f32 %v735, %v736
        %v738 = vmax.f32 %v513, %v517
        %v739 = vmax.f32 %v738, %v523
        %v740 = vmax.f32 %v739, %v527
        %v741 = vrot.slane %v740, 4
        %v742 = vmax.f32 %v740, %v741
        %v743 = vrot.slane %v742, 2
        %v744 = vmax.f32 %v742, %v743
        %v745 = vrot.slane %v744, 1
        %v746 = vmax.f32 %v744, %v745
        %v747 = vmax.f32 %v574, %v578
        %v748 = vmax.f32 %v747, %v584
        %v749 = vmax.f32 %v748, %v588
        %v750 = vrot.slane %v749, 4
        %v751 = vmax.f32 %v749, %v750
        %v752 = vrot.slane %v751, 2
        %v753 = vmax.f32 %v751, %v752
        %v754 = vrot.slane %v753, 1
        %v755 = vmax.f32 %v753, %v754
        %v756 = vmax.f32 %v576, %v580
        %v757 = vmax.f32 %v756, %v586
        %v758 = vmax.f32 %v757, %v590
        %v759 = vrot.slane %v758, 4
        %v760 = vmax.f32 %v758, %v759
        %v761 = vrot.slane %v760, 2
        %v762 = vmax.f32 %v760, %v761
        %v763 = vrot.slane %v762, 1
        %v764 = vmax.f32 %v762, %v763
        %v765 = vmax.f32 %v637, %v641
        %v766 = vmax.f32 %v765, %v647
        %v767 = vmax.f32 %v766, %v651
        %v768 = vrot.slane %v767, 4
        %v769 = vmax.f32 %v767, %v768
        %v770 = vrot.slane %v769, 2
        %v771 = vmax.f32 %v769, %v770
        %v772 = vrot.slane %v771, 1
        %v773 = vmax.f32 %v771, %v772
        %v774 = vmax.f32 %v639, %v643
        %v775 = vmax.f32 %v774, %v649
        %v776 = vmax.f32 %v775, %v653
        %v777 = vrot.slane %v776, 4
        %v778 = vmax.f32 %v776, %v777
        %v779 = vrot.slane %v778, 2
        %v780 = vmax.f32 %v778, %v779
        %v781 = vrot.slane %v780, 1
        %v782 = vmax.f32 %v780, %v781
        %v783 = vlaneseq
        %v784 = vshrl.u32 %v783, 7
        %v785 = vadd.s32 %v784, 8
        %v786 = vadd.s32 %v784, 16
        %v787 = vadd.s32 %v784, 24
        %v788 = vadd.s32 %v784, 32
        %v789 = vadd.s32 %v784, 40
        %vm790 = vcmp.lt.s32.totalorder %v784, 16
        %vm791 = vcmp.lt.s32.totalorder %v785, 16
        %vm792 = vcmp.lt.s32.totalorder %v786, 16
        %vm793 = vcmp.lt.s32.totalorder %v787, 16
        %vm794 = vcmp.lt.s32.totalorder %v788, 16
        %vm795 = vcmp.lt.s32.totalorder %v789, 16
        %v796 = vsel %vm790, 1, 0
        %v797 = vsel %vm791, 1, 0
        %v798 = vsel %vm792, 1, 0
        %v799 = vsel %vm793, 1, 0
        %v800 = vsel %vm794, 1, 0
        %v801 = vsel %vm795, 1, 0
        %vm802 = vcmp.eq.s32.totalorder %v796, 1
        %vm803 = vcmp.eq.s32.totalorder %v797, 1
        %vm804 = vcmp.eq.s32.totalorder %v798, 1
        %vm805 = vcmp.eq.s32.totalorder %v799, 1
        %vm806 = vcmp.eq.s32.totalorder %v800, 1
        %vm807 = vcmp.eq.s32.totalorder %v801, 1
        %v808 = vsel %vm802, %v661, %v719
        %v809 = vsel %vm802, %v668, %v728
        %v810 = vsel %vm802, %v675, %v737
        %v811 = vsel %vm802, %v682, %v746
        %v812 = vsel %vm802, %v689, %v755
        %v813 = vsel %vm802, %v696, %v764
        %v814 = vsel %vm802, %v703, %v773
        %v815 = vsel %vm802, %v710, %v782
        %v816 = vsel %vm803, %v661, %v719
        %v817 = vsel %vm803, %v668, %v728
        %v818 = vsel %vm803, %v675, %v737
        %v819 = vsel %vm803, %v682, %v746
        %v820 = vsel %vm803, %v689, %v755
        %v821 = vsel %vm803, %v696, %v764
        %v822 = vsel %vm803, %v703, %v773
        %v823 = vsel %vm803, %v710, %v782
        %v824 = vsel %vm804, %v661, %v719
        %v825 = vsel %vm804, %v668, %v728
        %v826 = vsel %vm804, %v675, %v737
        %v827 = vsel %vm804, %v682, %v746
        %v828 = vsel %vm804, %v689, %v755
        %v829 = vsel %vm804, %v696, %v764
        %v830 = vsel %vm804, %v703, %v773
        %v831 = vsel %vm804, %v710, %v782
        %v832 = vsel %vm805, %v661, %v719
        %v833 = vsel %vm805, %v668, %v728
        %v834 = vsel %vm805, %v675, %v737
        %v835 = vsel %vm805, %v682, %v746
        %v836 = vsel %vm805, %v689, %v755
        %v837 = vsel %vm805, %v696, %v764
        %v838 = vsel %vm805, %v703, %v773
        %v839 = vsel %vm805, %v710, %v782
        %v840 = vsel %vm806, %v661, %v719
        %v841 = vsel %vm806, %v668, %v728
        %v842 = vsel %vm806, %v675, %v737
        %v843 = vsel %vm806, %v682, %v746
        %v844 = vsel %vm806, %v689, %v755
        %v845 = vsel %vm806, %v696, %v764
        %v846 = vsel %vm806, %v703, %v773
        %v847 = vsel %vm806, %v710, %v782
        %v848 = vsel %vm807, %v661, %v719
        %v849 = vsel %vm807, %v668, %v728
        %v850 = vsel %vm807, %v675, %v737
        %v851 = vsel %vm807, %v682, %v746
        %v852 = vsel %vm807, %v689, %v755
        %v853 = vsel %vm807, %v696, %v764
        %v854 = vsel %vm807, %v703, %v773
        %v855 = vsel %vm807, %v710, %v782
        %v856 = vsub.f32 %v438, %v808
        %v857 = vsub.f32 %v440, %v809
        %v858 = vsub.f32 %v501, %v810
        %v859 = vsub.f32 %v503, %v811
        %v860 = vsub.f32 %v564, %v812
        %v861 = vsub.f32 %v566, %v813
        %v862 = vsub.f32 %v627, %v814
        %v863 = vsub.f32 %v629, %v815
        %v864 = vsub.f32 %v442, %v816
        %v865 = vsub.f32 %v444, %v817
        %v866 = vsub.f32 %v505, %v818
        %v867 = vsub.f32 %v507, %v819
        %v868 = vsub.f32 %v568, %v820
        %v869 = vsub.f32 %v570, %v821
        %v870 = vsub.f32 %v631, %v822
        %v871 = vsub.f32 %v633, %v823
        %v872 = vsub.f32 %v448, %v824
        %v873 = vsub.f32 %v450, %v825
        %v874 = vsub.f32 %v511, %v826
        %v875 = vsub.f32 %v513, %v827
        %v876 = vsub.f32 %v574, %v828
        %v877 = vsub.f32 %v576, %v829
        %v878 = vsub.f32 %v637, %v830
        %v879 = vsub.f32 %v639, %v831
        %v880 = vsub.f32 %v452, %v832
        %v881 = vsub.f32 %v454, %v833
        %v882 = vsub.f32 %v515, %v834
        %v883 = vsub.f32 %v517, %v835
        %v884 = vsub.f32 %v578, %v836
        %v885 = vsub.f32 %v580, %v837
        %v886 = vsub.f32 %v641, %v838
        %v887 = vsub.f32 %v643, %v839
        %v888 = vsub.f32 %v458, %v840
        %v889 = vsub.f32 %v460, %v841
        %v890 = vsub.f32 %v521, %v842
        %v891 = vsub.f32 %v523, %v843
        %v892 = vsub.f32 %v584, %v844
        %v893 = vsub.f32 %v586, %v845
        %v894 = vsub.f32 %v647, %v846
        %v895 = vsub.f32 %v649, %v847
        %v896 = vsub.f32 %v462, %v848
        %v897 = vsub.f32 %v464, %v849
        %v898 = vsub.f32 %v525, %v850
        %v899 = vsub.f32 %v527, %v851
        %v900 = vsub.f32 %v588, %v852
        %v901 = vsub.f32 %v590, %v853
        %v902 = vsub.f32 %v651, %v854
        %v903 = vsub.f32 %v653, %v855
        %v904 = vmul.f32 %v856, 1.442695
        %v905 = vpow.pop %v904
        %v906 = vmul.f32 %v857, 1.442695
        %v907 = vpow.pop %v906
        %v908 = vmul.f32 %v858, 1.442695
        %v909 = vpow.pop %v908
        %v910 = vmul.f32 %v859, 1.442695
        %v911 = vpow.pop %v910
        %v912 = vmul.f32 %v860, 1.442695
        %v913 = vpow.pop %v912
        %v914 = vmul.f32 %v861, 1.442695
        %v915 = vpow.pop %v914
        %v916 = vmul.f32 %v862, 1.442695
        %v917 = vpow.pop %v916
        %v918 = vmul.f32 %v863, 1.442695
        %v919 = vpow.pop %v918
        %v920 = vmul.f32 %v864, 1.442695
        %v921 = vpow.pop %v920
        %v922 = vmul.f32 %v865, 1.442695
        %v923 = vpow.pop %v922
        %v924 = vmul.f32 %v866, 1.442695
        %v925 = vpow.pop %v924
        %v926 = vmul.f32 %v867, 1.442695
        %v927 = vpow.pop %v926
        %v928 = vmul.f32 %v868, 1.442695
        %v929 = vpow.pop %v928
        %v930 = vmul.f32 %v869, 1.442695
        %v931 = vpow.pop %v930
        %v932 = vmul.f32 %v870, 1.442695
        %v933 = vpow.pop %v932
        %v934 = vmul.f32 %v871, 1.442695
        %v935 = vpow.pop %v934
        %v936 = vmul.f32 %v872, 1.442695
        %v937 = vpow.pop %v936
        %v938 = vmul.f32 %v873, 1.442695
        %v939 = vpow.pop %v938
        %v940 = vmul.f32 %v874, 1.442695
        %v941 = vpow.pop %v940
        %v942 = vmul.f32 %v875, 1.442695
        %v943 = vpow.pop %v942
        %v944 = vmul.f32 %v876, 1.442695
        %v945 = vpow.pop %v944
        %v946 = vmul.f32 %v877, 1.442695
        %v947 = vpow.pop %v946
        %v948 = vmul.f32 %v878, 1.442695
        %v949 = vpow.pop %v948
        %v950 = vmul.f32 %v879, 1.442695
        %v951 = vpow.pop %v950
        %v952 = vmul.f32 %v880, 1.442695
        %v953 = vpow.pop %v952
        %v954 = vmul.f32 %v881, 1.442695
        %v955 = vpow.pop %v954
        %v956 = vmul.f32 %v882, 1.442695
        %v957 = vpow.pop %v956
        %v958 = vmul.f32 %v883, 1.442695
        %v959 = vpow.pop %v958
        %v960 = vmul.f32 %v884, 1.442695
        %v961 = vpow.pop %v960
        %v962 = vmul.f32 %v885, 1.442695
        %v963 = vpow.pop %v962
        %v964 = vmul.f32 %v886, 1.442695
        %v965 = vpow.pop %v964
        %v966 = vmul.f32 %v887, 1.442695
        %v967 = vpow.pop %v966
        %v968 = vmul.f32 %v888, 1.442695
        %v969 = vpow.pop %v968
        %v970 = vmul.f32 %v889, 1.442695
        %v971 = vpow.pop %v970
        %v972 = vmul.f32 %v890, 1.442695
        %v973 = vpow.pop %v972
        %v974 = vmul.f32 %v891, 1.442695
        %v975 = vpow.pop %v974
        %v976 = vmul.f32 %v892, 1.442695
        %v977 = vpow.pop %v976
        %v978 = vmul.f32 %v893, 1.442695
        %v979 = vpow.pop %v978
        %v980 = vmul.f32 %v894, 1.442695
        %v981 = vpow.pop %v980
        %v982 = vmul.f32 %v895, 1.442695
        %v983 = vpow.pop %v982
        %v984 = vmul.f32 %v896, 1.442695
        %v985 = vpow.pop %v984
        %v986 = vmul.f32 %v897, 1.442695
        %v987 = vpow.pop %v986
        %v988 = vmul.f32 %v898, 1.442695
        %v989 = vpow.pop %v988
        %v990 = vmul.f32 %v899, 1.442695
        %v991 = vpow.pop %v990
        %v992 = vmul.f32 %v900, 1.442695
        %v993 = vpow.pop %v992
        %v994 = vmul.f32 %v901, 1.442695
        %v995 = vpow.pop %v994
        %v996 = vmul.f32 %v902, 1.442695
        %v997 = vpow.pop %v996
        %v998 = vmul.f32 %v903, 1.442695
        %v999 = vpow.pop %v998
        %v1000 = vadd.f32 %v905, %v921
        %v1001 = vrot.slane %v1000, 4
        %v1002 = vadd.f32 %v1000, %v1001
        %v1003 = vrot.slane %v1002, 2
        %v1004 = vadd.f32 %v1002, %v1003
        %v1005 = vrot.slane %v1004, 1
        %v1006 = vadd.f32 %v1004, %v1005
        %v1007 = vadd.f32 %v907, %v923
        %v1008 = vrot.slane %v1007, 4
        %v1009 = vadd.f32 %v1007, %v1008
        %v1010 = vrot.slane %v1009, 2
        %v1011 = vadd.f32 %v1009, %v1010
        %v1012 = vrot.slane %v1011, 1
        %v1013 = vadd.f32 %v1011, %v1012
        %v1014 = vadd.f32 %v909, %v925
        %v1015 = vrot.slane %v1014, 4
        %v1016 = vadd.f32 %v1014, %v1015
        %v1017 = vrot.slane %v1016, 2
        %v1018 = vadd.f32 %v1016, %v1017
        %v1019 = vrot.slane %v1018, 1
        %v1020 = vadd.f32 %v1018, %v1019
        %v1021 = vadd.f32 %v911, %v927
        %v1022 = vrot.slane %v1021, 4
        %v1023 = vadd.f32 %v1021, %v1022
        %v1024 = vrot.slane %v1023, 2
        %v1025 = vadd.f32 %v1023, %v1024
        %v1026 = vrot.slane %v1025, 1
        %v1027 = vadd.f32 %v1025, %v1026
        %v1028 = vadd.f32 %v913, %v929
        %v1029 = vrot.slane %v1028, 4
        %v1030 = vadd.f32 %v1028, %v1029
        %v1031 = vrot.slane %v1030, 2
        %v1032 = vadd.f32 %v1030, %v1031
        %v1033 = vrot.slane %v1032, 1
        %v1034 = vadd.f32 %v1032, %v1033
        %v1035 = vadd.f32 %v915, %v931
        %v1036 = vrot.slane %v1035, 4
        %v1037 = vadd.f32 %v1035, %v1036
        %v1038 = vrot.slane %v1037, 2
        %v1039 = vadd.f32 %v1037, %v1038
        %v1040 = vrot.slane %v1039, 1
        %v1041 = vadd.f32 %v1039, %v1040
        %v1042 = vadd.f32 %v917, %v933
        %v1043 = vrot.slane %v1042, 4
        %v1044 = vadd.f32 %v1042, %v1043
        %v1045 = vrot.slane %v1044, 2
        %v1046 = vadd.f32 %v1044, %v1045
        %v1047 = vrot.slane %v1046, 1
        %v1048 = vadd.f32 %v1046, %v1047
        %v1049 = vadd.f32 %v919, %v935
        %v1050 = vrot.slane %v1049, 4
        %v1051 = vadd.f32 %v1049, %v1050
        %v1052 = vrot.slane %v1051, 2
        %v1053 = vadd.f32 %v1051, %v1052
        %v1054 = vrot.slane %v1053, 1
        %v1055 = vadd.f32 %v1053, %v1054
        %v1056 = vrcp.pop %v1006
        %v1057 = vrcp.pop %v1013
        %v1058 = vrcp.pop %v1020
        %v1059 = vrcp.pop %v1027
        %v1060 = vrcp.pop %v1034
        %v1061 = vrcp.pop %v1041
        %v1062 = vrcp.pop %v1048
        %v1063 = vrcp.pop %v1055
        %v1064 = vadd.f32 %v937, %v953
        %v1065 = vadd.f32 %v1064, %v969
        %v1066 = vadd.f32 %v1065, %v985
        %v1067 = vrot.slane %v1066, 4
        %v1068 = vadd.f32 %v1066, %v1067
        %v1069 = vrot.slane %v1068, 2
        %v1070 = vadd.f32 %v1068, %v1069
        %v1071 = vrot.slane %v1070, 1
        %v1072 = vadd.f32 %v1070, %v1071
        %v1073 = vadd.f32 %v939, %v955
        %v1074 = vadd.f32 %v1073, %v971
        %v1075 = vadd.f32 %v1074, %v987
        %v1076 = vrot.slane %v1075, 4
        %v1077 = vadd.f32 %v1075, %v1076
        %v1078 = vrot.slane %v1077, 2
        %v1079 = vadd.f32 %v1077, %v1078
        %v1080 = vrot.slane %v1079, 1
        %v1081 = vadd.f32 %v1079, %v1080
        %v1082 = vadd.f32 %v941, %v957
        %v1083 = vadd.f32 %v1082, %v973
        %v1084 = vadd.f32 %v1083, %v989
        %v1085 = vrot.slane %v1084, 4
        %v1086 = vadd.f32 %v1084, %v1085
        %v1087 = vrot.slane %v1086, 2
        %v1088 = vadd.f32 %v1086, %v1087
        %v1089 = vrot.slane %v1088, 1
        %v1090 = vadd.f32 %v1088, %v1089
        %v1091 = vadd.f32 %v943, %v959
        %v1092 = vadd.f32 %v1091, %v975
        %v1093 = vadd.f32 %v1092, %v991
        %v1094 = vrot.slane %v1093, 4
        %v1095 = vadd.f32 %v1093, %v1094
        %v1096 = vrot.slane %v1095, 2
        %v1097 = vadd.f32 %v1095, %v1096
        %v1098 = vrot.slane %v1097, 1
        %v1099 = vadd.f32 %v1097, %v1098
        %v1100 = vadd.f32 %v945, %v961
        %v1101 = vadd.f32 %v1100, %v977
        %v1102 = vadd.f32 %v1101, %v993
        %v1103 = vrot.slane %v1102, 4
        %v1104 = vadd.f32 %v1102, %v1103
        %v1105 = vrot.slane %v1104, 2
        %v1106 = vadd.f32 %v1104, %v1105
        %v1107 = vrot.slane %v1106, 1
        %v1108 = vadd.f32 %v1106, %v1107
        %v1109 = vadd.f32 %v947, %v963
        %v1110 = vadd.f32 %v1109, %v979
        %v1111 = vadd.f32 %v1110, %v995
        %v1112 = vrot.slane %v1111, 4
        %v1113 = vadd.f32 %v1111, %v1112
        %v1114 = vrot.slane %v1113, 2
        %v1115 = vadd.f32 %v1113, %v1114
        %v1116 = vrot.slane %v1115, 1
        %v1117 = vadd.f32 %v1115, %v1116
        %v1118 = vadd.f32 %v949, %v965
        %v1119 = vadd.f32 %v1118, %v981
        %v1120 = vadd.f32 %v1119, %v997
        %v1121 = vrot.slane %v1120, 4
        %v1122 = vadd.f32 %v1120, %v1121
        %v1123 = vrot.slane %v1122, 2
        %v1124 = vadd.f32 %v1122, %v1123
        %v1125 = vrot.slane %v1124, 1
        %v1126 = vadd.f32 %v1124, %v1125
        %v1127 = vadd.f32 %v951, %v967
        %v1128 = vadd.f32 %v1127, %v983
        %v1129 = vadd.f32 %v1128, %v999
        %v1130 = vrot.slane %v1129, 4
        %v1131 = vadd.f32 %v1129, %v1130
        %v1132 = vrot.slane %v1131, 2
        %v1133 = vadd.f32 %v1131, %v1132
        %v1134 = vrot.slane %v1133, 1
        %v1135 = vadd.f32 %v1133, %v1134
        %v1136 = vrcp.pop %v1072
        %v1137 = vrcp.pop %v1081
        %v1138 = vrcp.pop %v1090
        %v1139 = vrcp.pop %v1099
        %v1140 = vrcp.pop %v1108
        %v1141 = vrcp.pop %v1117
        %v1142 = vrcp.pop %v1126
        %v1143 = vrcp.pop %v1135
        %v1144 = vsel %vm802, %v1056, %v1136
        %v1145 = vsel %vm802, %v1057, %v1137
        %v1146 = vsel %vm802, %v1058, %v1138
        %v1147 = vsel %vm802, %v1059, %v1139
        %v1148 = vsel %vm802, %v1060, %v1140
        %v1149 = vsel %vm802, %v1061, %v1141
        %v1150 = vsel %vm802, %v1062, %v1142
        %v1151 = vsel %vm802, %v1063, %v1143
        %v1152 = vsel %vm803, %v1056, %v1136
        %v1153 = vsel %vm803, %v1057, %v1137
        %v1154 = vsel %vm803, %v1058, %v1138
        %v1155 = vsel %vm803, %v1059, %v1139
        %v1156 = vsel %vm803, %v1060, %v1140
        %v1157 = vsel %vm803, %v1061, %v1141
        %v1158 = vsel %vm803, %v1062, %v1142
        %v1159 = vsel %vm803, %v1063, %v1143
        %v1160 = vsel %vm804, %v1056, %v1136
        %v1161 = vsel %vm804, %v1057, %v1137
        %v1162 = vsel %vm804, %v1058, %v1138
        %v1163 = vsel %vm804, %v1059, %v1139
        %v1164 = vsel %vm804, %v1060, %v1140
        %v1165 = vsel %vm804, %v1061, %v1141
        %v1166 = vsel %vm804, %v1062, %v1142
        %v1167 = vsel %vm804, %v1063, %v1143
        %v1168 = vsel %vm805, %v1056, %v1136
        %v1169 = vsel %vm805, %v1057, %v1137
        %v1170 = vsel %vm805, %v1058, %v1138
        %v1171 = vsel %vm805, %v1059, %v1139
        %v1172 = vsel %vm805, %v1060, %v1140
        %v1173 = vsel %vm805, %v1061, %v1141
        %v1174 = vsel %vm805, %v1062, %v1142
        %v1175 = vsel %vm805, %v1063, %v1143
        %v1176 = vsel %vm806, %v1056, %v1136
        %v1177 = vsel %vm806, %v1057, %v1137
        %v1178 = vsel %vm806, %v1058, %v1138
        %v1179 = vsel %vm806, %v1059, %v1139
        %v1180 = vsel %vm806, %v1060, %v1140
        %v1181 = vsel %vm806, %v1061, %v1141
        %v1182 = vsel %vm806, %v1062, %v1142
        %v1183 = vsel %vm806, %v1063, %v1143
        %v1184 = vsel %vm807, %v1056, %v1136
        %v1185 = vsel %vm807, %v1057, %v1137
        %v1186 = vsel %vm807, %v1058, %v1138
        %v1187 = vsel %vm807, %v1059, %v1139
        %v1188 = vsel %vm807, %v1060, %v1140
        %v1189 = vsel %vm807, %v1061, %v1141
        %v1190 = vsel %vm807, %v1062, %v1142
        %v1191 = vsel %vm807, %v1063, %v1143
        %v1192 = vmul.f32 %v905, %v1144
        %v1193 = vmul.f32 %v907, %v1145
        %v1194 = vmul.f32 %v909, %v1146
        %v1195 = vmul.f32 %v911, %v1147
        %v1196 = vmul.f32 %v913, %v1148
        %v1197 = vmul.f32 %v915, %v1149
        %v1198 = vmul.f32 %v917, %v1150
        %v1199 = vmul.f32 %v919, %v1151
        %v1200 = vmul.f32 %v921, %v1152
        %v1201 = vmul.f32 %v923, %v1153
        %v1202 = vmul.f32 %v925, %v1154
        %v1203 = vmul.f32 %v927, %v1155
        %v1204 = vmul.f32 %v929, %v1156
        %v1205 = vmul.f32 %v931, %v1157
        %v1206 = vmul.f32 %v933, %v1158
        %v1207 = vmul.f32 %v935, %v1159
        %v1208 = vmul.f32 %v937, %v1160
        %v1209 = vmul.f32 %v939, %v1161
        %v1210 = vmul.f32 %v941, %v1162
        %v1211 = vmul.f32 %v943, %v1163
        %v1212 = vmul.f32 %v945, %v1164
        %v1213 = vmul.f32 %v947, %v1165
        %v1214 = vmul.f32 %v949, %v1166
        %v1215 = vmul.f32 %v951, %v1167
        %v1216 = vmul.f32 %v953, %v1168
        %v1217 = vmul.f32 %v955, %v1169
        %v1218 = vmul.f32 %v957, %v1170
        %v1219 = vmul.f32 %v959, %v1171
        %v1220 = vmul.f32 %v961, %v1172
        %v1221 = vmul.f32 %v963, %v1173
        %v1222 = vmul.f32 %v965, %v1174
        %v1223 = vmul.f32 %v967, %v1175
        %v1224 = vmul.f32 %v969, %v1176
        %v1225 = vmul.f32 %v971, %v1177
        %v1226 = vmul.f32 %v973, %v1178
        %v1227 = vmul.f32 %v975, %v1179
        %v1228 = vmul.f32 %v977, %v1180
        %v1229 = vmul.f32 %v979, %v1181
        %v1230 = vmul.f32 %v981, %v1182
        %v1231 = vmul.f32 %v983, %v1183
        %v1232 = vmul.f32 %v985, %v1184
        %v1233 = vmul.f32 %v987, %v1185
        %v1234 = vmul.f32 %v989, %v1186
        %v1235 = vmul.f32 %v991, %v1187
        %v1236 = vmul.f32 %v993, %v1188
        %v1237 = vmul.f32 %v995, %v1189
        %v1238 = vmul.f32 %v997, %v1190
        %v1239 = vmul.f32 %v999, %v1191
        %v1240 = vpack.c.bf16 %v1200, %v1192
        %v1241 = vpack.c.bf16 %v1201, %v1193
        %v1242 = vpack.c.bf16 %v1202, %v1194
        %v1243 = vpack.c.bf16 %v1203, %v1195
        %v1244 = vpack.c.bf16 %v1204, %v1196
        %v1245 = vpack.c.bf16 %v1205, %v1197
        %v1246 = vpack.c.bf16 %v1206, %v1198
        %v1247 = vpack.c.bf16 %v1207, %v1199
        %v1248 = vpack.c.bf16 %v1216, %v1208
        %v1249 = vpack.c.bf16 %v1217, %v1209
        %v1250 = vpack.c.bf16 %v1218, %v1210
        %v1251 = vpack.c.bf16 %v1219, %v1211
        %v1252 = vpack.c.bf16 %v1220, %v1212
        %v1253 = vpack.c.bf16 %v1221, %v1213
        %v1254 = vpack.c.bf16 %v1222, %v1214
        %v1255 = vpack.c.bf16 %v1223, %v1215
        %v1256 = vpack.c.bf16 %v1232, %v1224
        %v1257 = vpack.c.bf16 %v1233, %v1225
        %v1258 = vpack.c.bf16 %v1234, %v1226
        %v1259 = vpack.c.bf16 %v1235, %v1227
        %v1260 = vpack.c.bf16 %v1236, %v1228
        %v1261 = vpack.c.bf16 %v1237, %v1229
        %v1262 = vpack.c.bf16 %v1238, %v1230
        %v1263 = vpack.c.bf16 %v1239, %v1231
        %v1272 = vunpack.c.l.b16 %v338
        %v1273 = vunpack.c.l.b16 %v339
        %v1274 = vunpack.c.l.b16 %v340
        %v1275 = vunpack.c.l.b16 %v341
        %v1276 = vunpack.c.l.b16 %v342
        %v1277 = vunpack.c.l.b16 %v343
        %v1278 = vunpack.c.l.b16 %v344
        %v1279 = vunpack.c.l.b16 %v345
        %v1280 = vpack.c.b16 %v1273, %v1272
        %v1281 = vpack.c.b16 %v1275, %v1274
        %v1282 = vpack.c.b16 %v1277, %v1276
        %v1283 = vpack.c.b16 %v1279, %v1278
        %vm1284 = vcmask 392192
        %v1286 = vsel %vm1284, %v1280, 0
        %v1289 = vsel %vm1284, %v1281, 0
        %v1292 = vsel %vm1284, %v1282, 0
        %v1295 = vsel %vm1284, %v1283, 0
        %1297 = vmatprep.subr.bf16.mxu0 %v1241
        %1298 = vmatpush1.bf16.msra.mxu0 %v1240
        %1299 = vmatprep.subr.bf16.mxu0 %v1249
        %1300 = vmatpush1.bf16.msra.mxu0 %v1248
        %1301 = vmatprep.subr.bf16.mxu0 %v1257
        %1302 = vmatpush1.bf16.msra.mxu0 %v1256
        %1303 = vmatprep.subr.bf16.mxu0 0
        %1304 = vmatpush1.bf16.msra.mxu0 0
        %1305 = vmatprep.subr.bf16.mxu0 0
        %1306 = vmatpush1.bf16.msra.mxu0 0
        %1307 = vmatprep.subr.bf16.mxu0 0
        %1308 = vmatpush1.bf16.msra.mxu0 0
        %1309 = vmatprep.subr.bf16.mxu0 0
        %1310 = vmatpush1.bf16.msra.mxu0 0
        %1311 = vmatprep.subr.bf16.mxu0 0
        %1312 = vmatpush1.bf16.msra.mxu0 0
        %1313 = vmatprep.subr.bf16.mxu0 0
        %1314 = vmatpush1.bf16.msra.mxu0 0
        %1315 = vmatprep.subr.bf16.mxu0 0
        %1316 = vmatpush1.bf16.msra.mxu0 0
        %1317 = vmatprep.subr.bf16.mxu0 0
        %1318 = vmatpush1.bf16.msra.mxu0 0
        %1319 = vmatprep.subr.bf16.mxu0 0
        %1320 = vmatpush1.bf16.msra.mxu0 0
        %1321 = vmatprep.subr.bf16.mxu0 0
        %1322 = vmatpush1.bf16.msra.mxu0 0
        %1323 = vmatprep.subr.bf16.mxu0 0
        %1324 = vmatpush1.bf16.msra.mxu0 0
        %1325 = vmatprep.subr.bf16.mxu0 0
        %1326 = vmatpush1.bf16.msra.mxu0 0
        %1327 = vmatprep.subr.bf16.mxu0 0
        %1328 = vmatpush1.bf16.msra.mxu0 0
        %1329 = vmatprep.mubr.bf16.mxu0 0
        %1330 = vmatmul.mubr.bf16.gmra.mrb[0].mxu0 %v1286
        %v1331 = vpop.f32.mrb[0].mxu0
        %v1332 = vadd.f32 0.0, %v1331
        %v1333 = vpop.f32.mrb[0].mxu0
        %v1334 = vadd.f32 0.0, %v1333
        %v1335 = vpop.f32.mrb[0].mxu0
        %v1336 = vadd.f32 0.0, %v1335
        %v1337 = vpop.f32.mrb[0].mxu0
        %v1338 = vadd.f32 0.0, %v1337
        %1339 = vmatprep.mubr.bf16.mxu0 0
        %1340 = vmatmul.mubr.bf16.gmra.mrb[0].mxu0 %v1289
        %v1341 = vpop.f32.mrb[0].mxu0
        %v1342 = vadd.f32 0.0, %v1341
        %v1343 = vpop.f32.mrb[0].mxu0
        %v1344 = vadd.f32 0.0, %v1343
        %v1345 = vpop.f32.mrb[0].mxu0
        %v1346 = vadd.f32 0.0, %v1345
        %v1347 = vpop.f32.mrb[0].mxu0
        %v1348 = vadd.f32 0.0, %v1347
        %1349 = vmatprep.mubr.bf16.mxu0 0
        %1350 = vmatmul.mubr.bf16.gmra.mrb[0].mxu0 %v1292
        %v1351 = vpop.f32.mrb[0].mxu0
        %v1352 = vadd.f32 0.0, %v1351
        %v1353 = vpop.f32.mrb[0].mxu0
        %v1354 = vadd.f32 0.0, %v1353
        %v1355 = vpop.f32.mrb[0].mxu0
        %v1356 = vadd.f32 0.0, %v1355
        %v1357 = vpop.f32.mrb[0].mxu0
        %v1358 = vadd.f32 0.0, %v1357
        %1359 = vmatprep.mubr.bf16.mxu0 0
        %1360 = vmatmul.mubr.bf16.gmra.mrb[0].mxu0 %v1295
        %v1361 = vpop.f32.mrb[0].mxu0
        %v1362 = vadd.f32 0.0, %v1361
        %v1363 = vpop.f32.mrb[0].mxu0
        %v1364 = vadd.f32 0.0, %v1363
        %v1365 = vpop.f32.mrb[0].mxu0
        %v1366 = vadd.f32 0.0, %v1365
        %v1367 = vpop.f32.mrb[0].mxu0
        %v1368 = vadd.f32 0.0, %v1367
        %1369 = vdwg.mxu0
        %1370 = vmatprep.subr.bf16.mxu0 %v1243
        %1371 = vmatpush1.bf16.msra.mxu0 %v1242
        %1372 = vmatprep.subr.bf16.mxu0 %v1251
        %1373 = vmatpush1.bf16.msra.mxu0 %v1250
        %1374 = vmatprep.subr.bf16.mxu0 %v1259
        %1375 = vmatpush1.bf16.msra.mxu0 %v1258
        %1376 = vmatprep.subr.bf16.mxu0 0
        %1377 = vmatpush1.bf16.msra.mxu0 0
        %1378 = vmatprep.subr.bf16.mxu0 0
        %1379 = vmatpush1.bf16.msra.mxu0 0
        %1380 = vmatprep.subr.bf16.mxu0 0
        %1381 = vmatpush1.bf16.msra.mxu0 0
        %1382 = vmatprep.subr.bf16.mxu0 0
        %1383 = vmatpush1.bf16.msra.mxu0 0
        %1384 = vmatprep.subr.bf16.mxu0 0
        %1385 = vmatpush1.bf16.msra.mxu0 0
        %1386 = vmatprep.subr.bf16.mxu0 0
        %1387 = vmatpush1.bf16.msra.mxu0 0
        %1388 = vmatprep.subr.bf16.mxu0 0
        %1389 = vmatpush1.bf16.msra.mxu0 0
        %1390 = vmatprep.subr.bf16.mxu0 0
        %1391 = vmatpush1.bf16.msra.mxu0 0
        %1392 = vmatprep.subr.bf16.mxu0 0
        %1393 = vmatpush1.bf16.msra.mxu0 0
        %1394 = vmatprep.subr.bf16.mxu0 0
        %1395 = vmatpush1.bf16.msra.mxu0 0
        %1396 = vmatprep.subr.bf16.mxu0 0
        %1397 = vmatpush1.bf16.msra.mxu0 0
        %1398 = vmatprep.subr.bf16.mxu0 0
        %1399 = vmatpush1.bf16.msra.mxu0 0
        %1400 = vmatprep.subr.bf16.mxu0 0
        %1401 = vmatpush1.bf16.msra.mxu0 0
        %1402 = vmatprep.mubr.bf16.mxu0 0
        %1403 = vmatmul.mubr.bf16.gmra.mrb[0].mxu0 %v1286
        %v1404 = vpop.f32.mrb[0].mxu0
        %v1405 = vadd.f32 0.0, %v1404
        %v1406 = vpop.f32.mrb[0].mxu0
        %v1407 = vadd.f32 0.0, %v1406
        %v1408 = vpop.f32.mrb[0].mxu0
        %v1409 = vadd.f32 0.0, %v1408
        %v1410 = vpop.f32.mrb[0].mxu0
        %v1411 = vadd.f32 0.0, %v1410
        %1412 = vmatprep.mubr.bf16.mxu0 0
        %1413 = vmatmul.mubr.bf16.gmra.mrb[0].mxu0 %v1289
        %v1414 = vpop.f32.mrb[0].mxu0
        %v1415 = vadd.f32 0.0, %v1414
        %v1416 = vpop.f32.mrb[0].mxu0
        %v1417 = vadd.f32 0.0, %v1416
        %v1418 = vpop.f32.mrb[0].mxu0
        %v1419 = vadd.f32 0.0, %v1418
        %v1420 = vpop.f32.mrb[0].mxu0
        %v1421 = vadd.f32 0.0, %v1420
        %1422 = vmatprep.mubr.bf16.mxu0 0
        %1423 = vmatmul.mubr.bf16.gmra.mrb[0].mxu0 %v1292
        %v1424 = vpop.f32.mrb[0].mxu0
        %v1425 = vadd.f32 0.0, %v1424
        %v1426 = vpop.f32.mrb[0].mxu0
        %v1427 = vadd.f32 0.0, %v1426
        %v1428 = vpop.f32.mrb[0].mxu0
        %v1429 = vadd.f32 0.0, %v1428
        %v1430 = vpop.f32.mrb[0].mxu0
        %v1431 = vadd.f32 0.0, %v1430
        %1432 = vmatprep.mubr.bf16.mxu0 0
        %1433 = vmatmul.mubr.bf16.gmra.mrb[0].mxu0 %v1295
        %v1434 = vpop.f32.mrb[0].mxu0
        %v1435 = vadd.f32 0.0, %v1434
        %v1436 = vpop.f32.mrb[0].mxu0
        %v1437 = vadd.f32 0.0, %v1436
        %v1438 = vpop.f32.mrb[0].mxu0
        %v1439 = vadd.f32 0.0, %v1438
        %v1440 = vpop.f32.mrb[0].mxu0
        %v1441 = vadd.f32 0.0, %v1440
        %1442 = vdwg.mxu0
        %1443 = vmatprep.subr.bf16.mxu0 %v1245
        %1444 = vmatpush1.bf16.msra.mxu0 %v1244
        %1445 = vmatprep.subr.bf16.mxu0 %v1253
        %1446 = vmatpush1.bf16.msra.mxu0 %v1252
        %1447 = vmatprep.subr.bf16.mxu0 %v1261
        %1448 = vmatpush1.bf16.msra.mxu0 %v1260
        %1449 = vmatprep.subr.bf16.mxu0 0
        %1450 = vmatpush1.bf16.msra.mxu0 0
        %1451 = vmatprep.subr.bf16.mxu0 0
        %1452 = vmatpush1.bf16.msra.mxu0 0
        %1453 = vmatprep.subr.bf16.mxu0 0
        %1454 = vmatpush1.bf16.msra.mxu0 0
        %1455 = vmatprep.subr.bf16.mxu0 0
        %1456 = vmatpush1.bf16.msra.mxu0 0
        %1457 = vmatprep.subr.bf16.mxu0 0
        %1458 = vmatpush1.bf16.msra.mxu0 0
        %1459 = vmatprep.subr.bf16.mxu0 0
        %1460 = vmatpush1.bf16.msra.mxu0 0
        %1461 = vmatprep.subr.bf16.mxu0 0
        %1462 = vmatpush1.bf16.msra.mxu0 0
        %1463 = vmatprep.subr.bf16.mxu0 0
        %1464 = vmatpush1.bf16.msra.mxu0 0
        %1465 = vmatprep.subr.bf16.mxu0 0
        %1466 = vmatpush1.bf16.msra.mxu0 0
        %1467 = vmatprep.subr.bf16.mxu0 0
        %1468 = vmatpush1.bf16.msra.mxu0 0
        %1469 = vmatprep.subr.bf16.mxu0 0
        %1470 = vmatpush1.bf16.msra.mxu0 0
        %1471 = vmatprep.subr.bf16.mxu0 0
        %1472 = vmatpush1.bf16.msra.mxu0 0
        %1473 = vmatprep.subr.bf16.mxu0 0
        %1474 = vmatpush1.bf16.msra.mxu0 0
        %1475 = vmatprep.mubr.bf16.mxu0 0
        %1476 = vmatmul.mubr.bf16.gmra.mrb[0].mxu0 %v1286
        %v1477 = vpop.f32.mrb[0].mxu0
        %v1478 = vadd.f32 0.0, %v1477
        %v1479 = vpop.f32.mrb[0].mxu0
        %v1480 = vadd.f32 0.0, %v1479
        %v1481 = vpop.f32.mrb[0].mxu0
        %v1482 = vadd.f32 0.0, %v1481
        %v1483 = vpop.f32.mrb[0].mxu0
        %v1484 = vadd.f32 0.0, %v1483
        %1485 = vmatprep.mubr.bf16.mxu0 0
        %1486 = vmatmul.mubr.bf16.gmra.mrb[0].mxu0 %v1289
        %v1487 = vpop.f32.mrb[0].mxu0
        %v1488 = vadd.f32 0.0, %v1487
        %v1489 = vpop.f32.mrb[0].mxu0
        %v1490 = vadd.f32 0.0, %v1489
        %v1491 = vpop.f32.mrb[0].mxu0
        %v1492 = vadd.f32 0.0, %v1491
        %v1493 = vpop.f32.mrb[0].mxu0
        %v1494 = vadd.f32 0.0, %v1493
        %1495 = vmatprep.mubr.bf16.mxu0 0
        %1496 = vmatmul.mubr.bf16.gmra.mrb[0].mxu0 %v1292
        %v1497 = vpop.f32.mrb[0].mxu0
        %v1498 = vadd.f32 0.0, %v1497
        %v1499 = vpop.f32.mrb[0].mxu0
        %v1500 = vadd.f32 0.0, %v1499
        %v1501 = vpop.f32.mrb[0].mxu0
        %v1502 = vadd.f32 0.0, %v1501
        %v1503 = vpop.f32.mrb[0].mxu0
        %v1504 = vadd.f32 0.0, %v1503
        %1505 = vmatprep.mubr.bf16.mxu0 0
        %1506 = vmatmul.mubr.bf16.gmra.mrb[0].mxu0 %v1295
        %v1507 = vpop.f32.mrb[0].mxu0
        %v1508 = vadd.f32 0.0, %v1507
        %v1509 = vpop.f32.mrb[0].mxu0
        %v1510 = vadd.f32 0.0, %v1509
        %v1511 = vpop.f32.mrb[0].mxu0
        %v1512 = vadd.f32 0.0, %v1511
        %v1513 = vpop.f32.mrb[0].mxu0
        %v1514 = vadd.f32 0.0, %v1513
        %1515 = vdwg.mxu0
        %1516 = vmatprep.subr.bf16.mxu0 %v1247
        %1517 = vmatpush1.bf16.msra.mxu0 %v1246
        %1518 = vmatprep.subr.bf16.mxu0 %v1255
        %1519 = vmatpush1.bf16.msra.mxu0 %v1254
        %1520 = vmatprep.subr.bf16.mxu0 %v1263
        %1521 = vmatpush1.bf16.msra.mxu0 %v1262
        %1522 = vmatprep.subr.bf16.mxu0 0
        %1523 = vmatpush1.bf16.msra.mxu0 0
        %1524 = vmatprep.subr.bf16.mxu0 0
        %1525 = vmatpush1.bf16.msra.mxu0 0
        %1526 = vmatprep.subr.bf16.mxu0 0
        %1527 = vmatpush1.bf16.msra.mxu0 0
        %1528 = vmatprep.subr.bf16.mxu0 0
        %1529 = vmatpush1.bf16.msra.mxu0 0
        %1530 = vmatprep.subr.bf16.mxu0 0
        %1531 = vmatpush1.bf16.msra.mxu0 0
        %1532 = vmatprep.subr.bf16.mxu0 0
        %1533 = vmatpush1.bf16.msra.mxu0 0
        %1534 = vmatprep.subr.bf16.mxu0 0
        %1535 = vmatpush1.bf16.msra.mxu0 0
        %1536 = vmatprep.subr.bf16.mxu0 0
        %1537 = vmatpush1.bf16.msra.mxu0 0
        %1538 = vmatprep.subr.bf16.mxu0 0
        %1539 = vmatpush1.bf16.msra.mxu0 0
        %1540 = vmatprep.subr.bf16.mxu0 0
        %1541 = vmatpush1.bf16.msra.mxu0 0
        %1542 = vmatprep.subr.bf16.mxu0 0
        %1543 = vmatpush1.bf16.msra.mxu0 0
        %1544 = vmatprep.subr.bf16.mxu0 0
        %1545 = vmatpush1.bf16.msra.mxu0 0
        %1546 = vmatprep.subr.bf16.mxu0 0
        %1547 = vmatpush1.bf16.msra.mxu0 0
        %1548 = vmatprep.mubr.bf16.mxu0 0
        %1549 = vmatmul.mubr.bf16.gmra.mrb[0].mxu0 %v1286
        %v1550 = vpop.f32.mrb[0].mxu0
        %v1551 = vadd.f32 0.0, %v1550
        %v1552 = vpop.f32.mrb[0].mxu0
        %v1553 = vadd.f32 0.0, %v1552
        %v1554 = vpop.f32.mrb[0].mxu0
        %v1555 = vadd.f32 0.0, %v1554
        %v1556 = vpop.f32.mrb[0].mxu0
        %v1557 = vadd.f32 0.0, %v1556
        %1558 = vmatprep.mubr.bf16.mxu0 0
        %1559 = vmatmul.mubr.bf16.gmra.mrb[0].mxu0 %v1289
        %v1560 = vpop.f32.mrb[0].mxu0
        %v1561 = vadd.f32 0.0, %v1560
        %v1562 = vpop.f32.mrb[0].mxu0
        %v1563 = vadd.f32 0.0, %v1562
        %v1564 = vpop.f32.mrb[0].mxu0
        %v1565 = vadd.f32 0.0, %v1564
        %v1566 = vpop.f32.mrb[0].mxu0
        %v1567 = vadd.f32 0.0, %v1566
        %1568 = vmatprep.mubr.bf16.mxu0 0
        %1569 = vmatmul.mubr.bf16.gmra.mrb[0].mxu0 %v1292
        %v1570 = vpop.f32.mrb[0].mxu0
        %v1571 = vadd.f32 0.0, %v1570
        %v1572 = vpop.f32.mrb[0].mxu0
        %v1573 = vadd.f32 0.0, %v1572
        %v1574 = vpop.f32.mrb[0].mxu0
        %v1575 = vadd.f32 0.0, %v1574
        %v1576 = vpop.f32.mrb[0].mxu0
        %v1577 = vadd.f32 0.0, %v1576
        %1578 = vmatprep.mubr.bf16.mxu0 0
        %1579 = vmatmul.mubr.bf16.gmra.mrb[0].mxu0 %v1295
        %v1580 = vpop.f32.mrb[0].mxu0
        %v1581 = vadd.f32 0.0, %v1580
        %v1582 = vpop.f32.mrb[0].mxu0
        %v1583 = vadd.f32 0.0, %v1582
        %v1584 = vpop.f32.mrb[0].mxu0
        %v1585 = vadd.f32 0.0, %v1584
        %v1586 = vpop.f32.mrb[0].mxu0
        %v1587 = vadd.f32 0.0, %v1586
        %1588 = vdwg.mxu0
        %v1589 = vadd.f32 %v268, %v1332
        %v1590 = vadd.f32 %v269, %v1334
        %v1591 = vadd.f32 %v270, %v1405
        %v1592 = vadd.f32 %v271, %v1407
        %v1593 = vadd.f32 %v272, %v1478
        %v1594 = vadd.f32 %v273, %v1480
        %v1595 = vadd.f32 %v274, %v1551
        %v1596 = vadd.f32 %v275, %v1553
        %v1597 = vadd.f32 %v276, %v1336
        %v1598 = vadd.f32 %v277, %v1338
        %v1599 = vadd.f32 %v278, %v1409
        %v1600 = vadd.f32 %v279, %v1411
        %v1601 = vadd.f32 %v280, %v1482
        %v1602 = vadd.f32 %v281, %v1484
        %v1603 = vadd.f32 %v282, %v1555
        %v1604 = vadd.f32 %v283, %v1557
        %v1605 = vadd.f32 %v284, %v1342
        %v1606 = vadd.f32 %v285, %v1344
        %v1607 = vadd.f32 %v286, %v1415
        %v1608 = vadd.f32 %v287, %v1417
        %v1609 = vadd.f32 %v288, %v1488
        %v1610 = vadd.f32 %v289, %v1490
        %v1611 = vadd.f32 %v290, %v1561
        %v1612 = vadd.f32 %v291, %v1563
        %v1613 = vadd.f32 %v292, %v1346
        %v1614 = vadd.f32 %v293, %v1348
        %v1615 = vadd.f32 %v294, %v1419
        %v1616 = vadd.f32 %v295, %v1421
        %v1617 = vadd.f32 %v296, %v1492
        %v1618 = vadd.f32 %v297, %v1494
        %v1619 = vadd.f32 %v298, %v1565
        %v1620 = vadd.f32 %v299, %v1567
        %v1621 = vadd.f32 %v300, %v1352
        %v1622 = vadd.f32 %v301, %v1354
        %v1623 = vadd.f32 %v302, %v1425
        %v1624 = vadd.f32 %v303, %v1427
        %v1625 = vadd.f32 %v304, %v1498
        %v1626 = vadd.f32 %v305, %v1500
        %v1627 = vadd.f32 %v306, %v1571
        %v1628 = vadd.f32 %v307, %v1573
        %v1629 = vadd.f32 %v308, %v1356
        %v1630 = vadd.f32 %v309, %v1358
        %v1631 = vadd.f32 %v310, %v1429
        %v1632 = vadd.f32 %v311, %v1431
        %v1633 = vadd.f32 %v312, %v1502
        %v1634 = vadd.f32 %v313, %v1504
        %v1635 = vadd.f32 %v314, %v1575
        %v1636 = vadd.f32 %v315, %v1577
        %v1637 = vadd.f32 %v316, %v1362
        %v1638 = vadd.f32 %v317, %v1364
        %v1639 = vadd.f32 %v318, %v1435
        %v1640 = vadd.f32 %v319, %v1437
        %v1641 = vadd.f32 %v320, %v1508
        %v1642 = vadd.f32 %v321, %v1510
        %v1643 = vadd.f32 %v322, %v1581
        %v1644 = vadd.f32 %v323, %v1583
        %v1645 = vadd.f32 %v324, %v1366
        %v1646 = vadd.f32 %v325, %v1368
        %v1647 = vadd.f32 %v326, %v1439
        %v1648 = vadd.f32 %v327, %v1441
        %v1649 = vadd.f32 %v328, %v1512
        %v1650 = vadd.f32 %v329, %v1514
        %v1651 = vadd.f32 %v330, %v1585
        %v1652 = vadd.f32 %v331, %v1587
        %v1653 = vld [vmem:[%s3] sm:$0xff]
        %v1654 = vld [vmem:[%s3 + $0x8] sm:$0xff]
        %v1655 = vld [vmem:[%s3 + $0x10] sm:$0xff]
        %v1656 = vld [vmem:[%s3 + $0x18] sm:$0xff]
        %v1657 = vld [vmem:[%s3 + $0x20] sm:$0xff]
        %v1658 = vld [vmem:[%s3 + $0x28] sm:$0xff]
        %v1659 = vld [vmem:[%s3 + $0x30] sm:$0xff]
        %v1660 = vld [vmem:[%s3 + $0x38] sm:$0xff]
        %1662 = vset.pattern.permute.xlu0 0
        %1663 = vperm.xlu0 %1662, %v1653
        %v1664 = vpop.permute.xlu0 %1663
        %1667 = vset.pattern.permute.xlu0 0
        %1668 = vperm.xlu0 %1667, %v1654
        %v1669 = vpop.permute.xlu0 %1668
        %1672 = vset.pattern.permute.xlu0 0
        %1673 = vperm.xlu0 %1672, %v1655
        %v1674 = vpop.permute.xlu0 %1673
        %1677 = vset.pattern.permute.xlu0 0
        %1678 = vperm.xlu0 %1677, %v1656
        %v1679 = vpop.permute.xlu0 %1678
        %1682 = vset.pattern.permute.xlu0 0
        %1683 = vperm.xlu0 %1682, %v1657
        %v1684 = vpop.permute.xlu0 %1683
        %1687 = vset.pattern.permute.xlu0 0
        %1688 = vperm.xlu0 %1687, %v1658
        %v1689 = vpop.permute.xlu0 %1688
        %1692 = vset.pattern.permute.xlu0 0
        %1693 = vperm.xlu0 %1692, %v1659
        %v1694 = vpop.permute.xlu0 %1693
        %1697 = vset.pattern.permute.xlu0 0
        %1698 = vperm.xlu0 %1697, %v1660
        %v1699 = vpop.permute.xlu0 %1698
        %v1701 = vadd.f32 %v1589, %v1664
        %v1702 = vadd.f32 %v1590, %v1664
        %v1703 = vadd.f32 %v1591, %v1664
        %v1704 = vadd.f32 %v1592, %v1664
        %v1705 = vadd.f32 %v1593, %v1664
        %v1706 = vadd.f32 %v1594, %v1664
        %v1707 = vadd.f32 %v1595, %v1664
        %v1708 = vadd.f32 %v1596, %v1664
        %v1709 = vadd.f32 %v1597, %v1669
        %v1710 = vadd.f32 %v1598, %v1669
        %v1711 = vadd.f32 %v1599, %v1669
        %v1712 = vadd.f32 %v1600, %v1669
        %v1713 = vadd.f32 %v1601, %v1669
        %v1714 = vadd.f32 %v1602, %v1669
        %v1715 = vadd.f32 %v1603, %v1669
        %v1716 = vadd.f32 %v1604, %v1669
        %v1717 = vadd.f32 %v1605, %v1674
        %v1718 = vadd.f32 %v1606, %v1674
        %v1719 = vadd.f32 %v1607, %v1674
        %v1720 = vadd.f32 %v1608, %v1674
        %v1721 = vadd.f32 %v1609, %v1674
        %v1722 = vadd.f32 %v1610, %v1674
        %v1723 = vadd.f32 %v1611, %v1674
        %v1724 = vadd.f32 %v1612, %v1674
        %v1725 = vadd.f32 %v1613, %v1679
        %v1726 = vadd.f32 %v1614, %v1679
        %v1727 = vadd.f32 %v1615, %v1679
        %v1728 = vadd.f32 %v1616, %v1679
        %v1729 = vadd.f32 %v1617, %v1679
        %v1730 = vadd.f32 %v1618, %v1679
        %v1731 = vadd.f32 %v1619, %v1679
        %v1732 = vadd.f32 %v1620, %v1679
        %v1733 = vadd.f32 %v1621, %v1684
        %v1734 = vadd.f32 %v1622, %v1684
        %v1735 = vadd.f32 %v1623, %v1684
        %v1736 = vadd.f32 %v1624, %v1684
        %v1737 = vadd.f32 %v1625, %v1684
        %v1738 = vadd.f32 %v1626, %v1684
        %v1739 = vadd.f32 %v1627, %v1684
        %v1740 = vadd.f32 %v1628, %v1684
        %v1741 = vadd.f32 %v1629, %v1689
        %v1742 = vadd.f32 %v1630, %v1689
        %v1743 = vadd.f32 %v1631, %v1689
        %v1744 = vadd.f32 %v1632, %v1689
        %v1745 = vadd.f32 %v1633, %v1689
        %v1746 = vadd.f32 %v1634, %v1689
        %v1747 = vadd.f32 %v1635, %v1689
        %v1748 = vadd.f32 %v1636, %v1689
        %v1749 = vadd.f32 %v1637, %v1694
        %v1750 = vadd.f32 %v1638, %v1694
        %v1751 = vadd.f32 %v1639, %v1694
        %v1752 = vadd.f32 %v1640, %v1694
        %v1753 = vadd.f32 %v1641, %v1694
        %v1754 = vadd.f32 %v1642, %v1694
        %v1755 = vadd.f32 %v1643, %v1694
        %v1756 = vadd.f32 %v1644, %v1694
        %v1757 = vadd.f32 %v1645, %v1699
        %v1758 = vadd.f32 %v1646, %v1699
        %v1759 = vadd.f32 %v1647, %v1699
        %v1760 = vadd.f32 %v1648, %v1699
        %v1761 = vadd.f32 %v1649, %v1699
        %v1762 = vadd.f32 %v1650, %v1699
        %v1763 = vadd.f32 %v1651, %v1699
        %v1764 = vadd.f32 %v1652, %v1699
        %vm1765 = vcmp.ge.f32.partialorder %v1701, 0.0
        %vm1766 = vcmp.ge.f32.partialorder %v1702, 0.0
        %vm1767 = vcmp.ge.f32.partialorder %v1703, 0.0
        %vm1768 = vcmp.ge.f32.partialorder %v1704, 0.0
        %vm1769 = vcmp.ge.f32.partialorder %v1705, 0.0
        %vm1770 = vcmp.ge.f32.partialorder %v1706, 0.0
        %vm1771 = vcmp.ge.f32.partialorder %v1707, 0.0
        %vm1772 = vcmp.ge.f32.partialorder %v1708, 0.0
        %vm1773 = vcmp.ge.f32.partialorder %v1709, 0.0
        %vm1774 = vcmp.ge.f32.partialorder %v1710, 0.0
        %vm1775 = vcmp.ge.f32.partialorder %v1711, 0.0
        %vm1776 = vcmp.ge.f32.partialorder %v1712, 0.0
        %vm1777 = vcmp.ge.f32.partialorder %v1713, 0.0
        %vm1778 = vcmp.ge.f32.partialorder %v1714, 0.0
        %vm1779 = vcmp.ge.f32.partialorder %v1715, 0.0
        %vm1780 = vcmp.ge.f32.partialorder %v1716, 0.0
        %vm1781 = vcmp.ge.f32.partialorder %v1717, 0.0
        %vm1782 = vcmp.ge.f32.partialorder %v1718, 0.0
        %vm1783 = vcmp.ge.f32.partialorder %v1719, 0.0
        %vm1784 = vcmp.ge.f32.partialorder %v1720, 0.0
        %vm1785 = vcmp.ge.f32.partialorder %v1721, 0.0
        %vm1786 = vcmp.ge.f32.partialorder %v1722, 0.0
        %vm1787 = vcmp.ge.f32.partialorder %v1723, 0.0
        %vm1788 = vcmp.ge.f32.partialorder %v1724, 0.0
        %vm1789 = vcmp.ge.f32.partialorder %v1725, 0.0
        %vm1790 = vcmp.ge.f32.partialorder %v1726, 0.0
        %vm1791 = vcmp.ge.f32.partialorder %v1727, 0.0
        %vm1792 = vcmp.ge.f32.partialorder %v1728, 0.0
        %vm1793 = vcmp.ge.f32.partialorder %v1729, 0.0
        %vm1794 = vcmp.ge.f32.partialorder %v1730, 0.0
        %vm1795 = vcmp.ge.f32.partialorder %v1731, 0.0
        %vm1796 = vcmp.ge.f32.partialorder %v1732, 0.0
        %vm1797 = vcmp.ge.f32.partialorder %v1733, 0.0
        %vm1798 = vcmp.ge.f32.partialorder %v1734, 0.0
        %vm1799 = vcmp.ge.f32.partialorder %v1735, 0.0
        %vm1800 = vcmp.ge.f32.partialorder %v1736, 0.0
        %vm1801 = vcmp.ge.f32.partialorder %v1737, 0.0
        %vm1802 = vcmp.ge.f32.partialorder %v1738, 0.0
        %vm1803 = vcmp.ge.f32.partialorder %v1739, 0.0
        %vm1804 = vcmp.ge.f32.partialorder %v1740, 0.0
        %vm1805 = vcmp.ge.f32.partialorder %v1741, 0.0
        %vm1806 = vcmp.ge.f32.partialorder %v1742, 0.0
        %vm1807 = vcmp.ge.f32.partialorder %v1743, 0.0
        %vm1808 = vcmp.ge.f32.partialorder %v1744, 0.0
        %vm1809 = vcmp.ge.f32.partialorder %v1745, 0.0
        %vm1810 = vcmp.ge.f32.partialorder %v1746, 0.0
        %vm1811 = vcmp.ge.f32.partialorder %v1747, 0.0
        %vm1812 = vcmp.ge.f32.partialorder %v1748, 0.0
        %vm1813 = vcmp.ge.f32.partialorder %v1749, 0.0
        %vm1814 = vcmp.ge.f32.partialorder %v1750, 0.0
        %vm1815 = vcmp.ge.f32.partialorder %v1751, 0.0
        %vm1816 = vcmp.ge.f32.partialorder %v1752, 0.0
        %vm1817 = vcmp.ge.f32.partialorder %v1753, 0.0
        %vm1818 = vcmp.ge.f32.partialorder %v1754, 0.0
        %vm1819 = vcmp.ge.f32.partialorder %v1755, 0.0
        %vm1820 = vcmp.ge.f32.partialorder %v1756, 0.0
        %vm1821 = vcmp.ge.f32.partialorder %v1757, 0.0
        %vm1822 = vcmp.ge.f32.partialorder %v1758, 0.0
        %vm1823 = vcmp.ge.f32.partialorder %v1759, 0.0
        %vm1824 = vcmp.ge.f32.partialorder %v1760, 0.0
        %vm1825 = vcmp.ge.f32.partialorder %v1761, 0.0
        %vm1826 = vcmp.ge.f32.partialorder %v1762, 0.0
        %vm1827 = vcmp.ge.f32.partialorder %v1763, 0.0
        %vm1828 = vcmp.ge.f32.partialorder %v1764, 0.0
        %v1829 = vmul.f32 %v1701, 0.2
        %v1830 = vmul.f32 %v1702, 0.2
        %v1831 = vmul.f32 %v1703, 0.2
        %v1832 = vmul.f32 %v1704, 0.2
        %v1833 = vmul.f32 %v1705, 0.2
        %v1834 = vmul.f32 %v1706, 0.2
        %v1835 = vmul.f32 %v1707, 0.2
        %v1836 = vmul.f32 %v1708, 0.2
        %v1837 = vmul.f32 %v1709, 0.2
        %v1838 = vmul.f32 %v1710, 0.2
        %v1839 = vmul.f32 %v1711, 0.2
        %v1840 = vmul.f32 %v1712, 0.2
        %v1841 = vmul.f32 %v1713, 0.2
        %v1842 = vmul.f32 %v1714, 0.2
        %v1843 = vmul.f32 %v1715, 0.2
        %v1844 = vmul.f32 %v1716, 0.2
        %v1845 = vmul.f32 %v1717, 0.2
        %v1846 = vmul.f32 %v1718, 0.2
        %v1847 = vmul.f32 %v1719, 0.2
        %v1848 = vmul.f32 %v1720, 0.2
        %v1849 = vmul.f32 %v1721, 0.2
        %v1850 = vmul.f32 %v1722, 0.2
        %v1851 = vmul.f32 %v1723, 0.2
        %v1852 = vmul.f32 %v1724, 0.2
        %v1853 = vmul.f32 %v1725, 0.2
        %v1854 = vmul.f32 %v1726, 0.2
        %v1855 = vmul.f32 %v1727, 0.2
        %v1856 = vmul.f32 %v1728, 0.2
        %v1857 = vmul.f32 %v1729, 0.2
        %v1858 = vmul.f32 %v1730, 0.2
        %v1859 = vmul.f32 %v1731, 0.2
        %v1860 = vmul.f32 %v1732, 0.2
        %v1861 = vmul.f32 %v1733, 0.2
        %v1862 = vmul.f32 %v1734, 0.2
        %v1863 = vmul.f32 %v1735, 0.2
        %v1864 = vmul.f32 %v1736, 0.2
        %v1865 = vmul.f32 %v1737, 0.2
        %v1866 = vmul.f32 %v1738, 0.2
        %v1867 = vmul.f32 %v1739, 0.2
        %v1868 = vmul.f32 %v1740, 0.2
        %v1869 = vmul.f32 %v1741, 0.2
        %v1870 = vmul.f32 %v1742, 0.2
        %v1871 = vmul.f32 %v1743, 0.2
        %v1872 = vmul.f32 %v1744, 0.2
        %v1873 = vmul.f32 %v1745, 0.2
        %v1874 = vmul.f32 %v1746, 0.2
        %v1875 = vmul.f32 %v1747, 0.2
        %v1876 = vmul.f32 %v1748, 0.2
        %v1877 = vmul.f32 %v1749, 0.2
        %v1878 = vmul.f32 %v1750, 0.2
        %v1879 = vmul.f32 %v1751, 0.2
        %v1880 = vmul.f32 %v1752, 0.2
        %v1881 = vmul.f32 %v1753, 0.2
        %v1882 = vmul.f32 %v1754, 0.2
        %v1883 = vmul.f32 %v1755, 0.2
        %v1884 = vmul.f32 %v1756, 0.2
        %v1885 = vmul.f32 %v1757, 0.2
        %v1886 = vmul.f32 %v1758, 0.2
        %v1887 = vmul.f32 %v1759, 0.2
        %v1888 = vmul.f32 %v1760, 0.2
        %v1889 = vmul.f32 %v1761, 0.2
        %v1890 = vmul.f32 %v1762, 0.2
        %v1891 = vmul.f32 %v1763, 0.2
        %v1892 = vmul.f32 %v1764, 0.2
        %v1893 = vsel %vm1765, %v1701, %v1829
        %v1894 = vsel %vm1766, %v1702, %v1830
        %v1895 = vsel %vm1767, %v1703, %v1831
        %v1896 = vsel %vm1768, %v1704, %v1832
        %v1897 = vsel %vm1769, %v1705, %v1833
        %v1898 = vsel %vm1770, %v1706, %v1834
        %v1899 = vsel %vm1771, %v1707, %v1835
        %v1900 = vsel %vm1772, %v1708, %v1836
        %v1901 = vsel %vm1773, %v1709, %v1837
        %v1902 = vsel %vm1774, %v1710, %v1838
        %v1903 = vsel %vm1775, %v1711, %v1839
        %v1904 = vsel %vm1776, %v1712, %v1840
        %v1905 = vsel %vm1777, %v1713, %v1841
        %v1906 = vsel %vm1778, %v1714, %v1842
        %v1907 = vsel %vm1779, %v1715, %v1843
        %v1908 = vsel %vm1780, %v1716, %v1844
        %v1909 = vsel %vm1781, %v1717, %v1845
        %v1910 = vsel %vm1782, %v1718, %v1846
        %v1911 = vsel %vm1783, %v1719, %v1847
        %v1912 = vsel %vm1784, %v1720, %v1848
        %v1913 = vsel %vm1785, %v1721, %v1849
        %v1914 = vsel %vm1786, %v1722, %v1850
        %v1915 = vsel %vm1787, %v1723, %v1851
        %v1916 = vsel %vm1788, %v1724, %v1852
        %v1917 = vsel %vm1789, %v1725, %v1853
        %v1918 = vsel %vm1790, %v1726, %v1854
        %v1919 = vsel %vm1791, %v1727, %v1855
        %v1920 = vsel %vm1792, %v1728, %v1856
        %v1921 = vsel %vm1793, %v1729, %v1857
        %v1922 = vsel %vm1794, %v1730, %v1858
        %v1923 = vsel %vm1795, %v1731, %v1859
        %v1924 = vsel %vm1796, %v1732, %v1860
        %v1925 = vsel %vm1797, %v1733, %v1861
        %v1926 = vsel %vm1798, %v1734, %v1862
        %v1927 = vsel %vm1799, %v1735, %v1863
        %v1928 = vsel %vm1800, %v1736, %v1864
        %v1929 = vsel %vm1801, %v1737, %v1865
        %v1930 = vsel %vm1802, %v1738, %v1866
        %v1931 = vsel %vm1803, %v1739, %v1867
        %v1932 = vsel %vm1804, %v1740, %v1868
        %v1933 = vsel %vm1805, %v1741, %v1869
        %v1934 = vsel %vm1806, %v1742, %v1870
        %v1935 = vsel %vm1807, %v1743, %v1871
        %v1936 = vsel %vm1808, %v1744, %v1872
        %v1937 = vsel %vm1809, %v1745, %v1873
        %v1938 = vsel %vm1810, %v1746, %v1874
        %v1939 = vsel %vm1811, %v1747, %v1875
        %v1940 = vsel %vm1812, %v1748, %v1876
        %v1941 = vsel %vm1813, %v1749, %v1877
        %v1942 = vsel %vm1814, %v1750, %v1878
        %v1943 = vsel %vm1815, %v1751, %v1879
        %v1944 = vsel %vm1816, %v1752, %v1880
        %v1945 = vsel %vm1817, %v1753, %v1881
        %v1946 = vsel %vm1818, %v1754, %v1882
        %v1947 = vsel %vm1819, %v1755, %v1883
        %v1948 = vsel %vm1820, %v1756, %v1884
        %v1949 = vsel %vm1821, %v1757, %v1885
        %v1950 = vsel %vm1822, %v1758, %v1886
        %v1951 = vsel %vm1823, %v1759, %v1887
        %v1952 = vsel %vm1824, %v1760, %v1888
        %v1953 = vsel %vm1825, %v1761, %v1889
        %v1954 = vsel %vm1826, %v1762, %v1890
        %v1955 = vsel %vm1827, %v1763, %v1891
        %v1956 = vsel %vm1828, %v1764, %v1892
        %1957 = vst [vmem:[%s245] sm:$0xff] %v1893
        %1958 = vst [vmem:[%s245 + $0x8] sm:$0xff] %v1894
        %1959 = vst [vmem:[%s245 + $0x10] sm:$0xff] %v1895
        %1960 = vst [vmem:[%s245 + $0x18] sm:$0xff] %v1896
        %1961 = vst [vmem:[%s245 + $0x20] sm:$0xff] %v1897
        %1962 = vst [vmem:[%s245 + $0x28] sm:$0xff] %v1898
        %1963 = vst [vmem:[%s245 + $0x30] sm:$0xff] %v1899
        %1964 = vst [vmem:[%s245 + $0x38] sm:$0xff] %v1900
        %1965 = vst [vmem:[%s245 + $0x40] sm:$0xff] %v1901
        %1966 = vst [vmem:[%s245 + $0x48] sm:$0xff] %v1902
        %1967 = vst [vmem:[%s245 + $0x50] sm:$0xff] %v1903
        %1968 = vst [vmem:[%s245 + $0x58] sm:$0xff] %v1904
        %1969 = vst [vmem:[%s245 + $0x60] sm:$0xff] %v1905
        %1970 = vst [vmem:[%s245 + $0x68] sm:$0xff] %v1906
        %1971 = vst [vmem:[%s245 + $0x70] sm:$0xff] %v1907
        %1972 = vst [vmem:[%s245 + $0x78] sm:$0xff] %v1908
        %1973 = vst [vmem:[%s245 + $0x80] sm:$0xff] %v1909
        %1974 = vst [vmem:[%s245 + $0x88] sm:$0xff] %v1910
        %1975 = vst [vmem:[%s245 + $0x90] sm:$0xff] %v1911
        %1976 = vst [vmem:[%s245 + $0x98] sm:$0xff] %v1912
        %1977 = vst [vmem:[%s245 + $0xa0] sm:$0xff] %v1913
        %1978 = vst [vmem:[%s245 + $0xa8] sm:$0xff] %v1914
        %1979 = vst [vmem:[%s245 + $0xb0] sm:$0xff] %v1915
        %1980 = vst [vmem:[%s245 + $0xb8] sm:$0xff] %v1916
        %1981 = vst [vmem:[%s245 + $0xc0] sm:$0xff] %v1917
        %1982 = vst [vmem:[%s245 + $0xc8] sm:$0xff] %v1918
        %1983 = vst [vmem:[%s245 + $0xd0] sm:$0xff] %v1919
        %1984 = vst [vmem:[%s245 + $0xd8] sm:$0xff] %v1920
        %1985 = vst [vmem:[%s245 + $0xe0] sm:$0xff] %v1921
        %1986 = vst [vmem:[%s245 + $0xe8] sm:$0xff] %v1922
        %1987 = vst [vmem:[%s245 + $0xf0] sm:$0xff] %v1923
        %1988 = vst [vmem:[%s245 + $0xf8] sm:$0xff] %v1924
        %1989 = vst [vmem:[%s245 + $0x100] sm:$0xff] %v1925
        %1990 = vst [vmem:[%s245 + $0x108] sm:$0xff] %v1926
        %1991 = vst [vmem:[%s245 + $0x110] sm:$0xff] %v1927
        %1992 = vst [vmem:[%s245 + $0x118] sm:$0xff] %v1928
        %1993 = vst [vmem:[%s245 + $0x120] sm:$0xff] %v1929
        %1994 = vst [vmem:[%s245 + $0x128] sm:$0xff] %v1930
        %1995 = vst [vmem:[%s245 + $0x130] sm:$0xff] %v1931
        %1996 = vst [vmem:[%s245 + $0x138] sm:$0xff] %v1932
        %1997 = vst [vmem:[%s245 + $0x140] sm:$0xff] %v1933
        %1998 = vst [vmem:[%s245 + $0x148] sm:$0xff] %v1934
        %1999 = vst [vmem:[%s245 + $0x150] sm:$0xff] %v1935
        %2000 = vst [vmem:[%s245 + $0x158] sm:$0xff] %v1936
        %2001 = vst [vmem:[%s245 + $0x160] sm:$0xff] %v1937
        %2002 = vst [vmem:[%s245 + $0x168] sm:$0xff] %v1938
        %2003 = vst [vmem:[%s245 + $0x170] sm:$0xff] %v1939
        %2004 = vst [vmem:[%s245 + $0x178] sm:$0xff] %v1940
        %2005 = vst [vmem:[%s245 + $0x180] sm:$0xff] %v1941
        %2006 = vst [vmem:[%s245 + $0x188] sm:$0xff] %v1942
        %2007 = vst [vmem:[%s245 + $0x190] sm:$0xff] %v1943
        %2008 = vst [vmem:[%s245 + $0x198] sm:$0xff] %v1944
        %2009 = vst [vmem:[%s245 + $0x1a0] sm:$0xff] %v1945
        %2010 = vst [vmem:[%s245 + $0x1a8] sm:$0xff] %v1946
        %2011 = vst [vmem:[%s245 + $0x1b0] sm:$0xff] %v1947
        %2012 = vst [vmem:[%s245 + $0x1b8] sm:$0xff] %v1948
        %2013 = vst [vmem:[%s245 + $0x1c0] sm:$0xff] %v1949
        %2014 = vst [vmem:[%s245 + $0x1c8] sm:$0xff] %v1950
        %2015 = vst [vmem:[%s245 + $0x1d0] sm:$0xff] %v1951
        %2016 = vst [vmem:[%s245 + $0x1d8] sm:$0xff] %v1952
        %2017 = vst [vmem:[%s245 + $0x1e0] sm:$0xff] %v1953
        %2018 = vst [vmem:[%s245 + $0x1e8] sm:$0xff] %v1954
        %2019 = vst [vmem:[%s245 + $0x1f0] sm:$0xff] %v1955
        %2020 = vst [vmem:[%s245 + $0x1f8] sm:$0xff] %v1956
        %s2021 = sand.u32 %s141, 1
        %s2022 = scalar_lea.sflag [#allocation3], %s2021
        %s2023 = sand.u32 %s141, 1
        %s2024 = smul.addr %s2023, 512
        %s2025 = scalar_lea.vmem [#allocation2], %s2024
        // Predicated region
        $region37: #{curve_aggregation_forward.1} parent=35 // pred_check
          %p2026 = pneg %p151
        $region38: #{curve_aggregation_forward.1} parent=35 // pred_check_branch
          %2028 = sbr.rel (%p2026) target = $region40
        $region39: #{curve_aggregation_forward.1} parent=35 // pred_region
          %s2029 = smul.u32 8, %s23
          %s2031 = ssub.s32 8192, 8192
          %2032 = vsyncadd %s2022, %s2031
          %s2033 = smul.addr %s22, 64
          %s2034 = sadd.s32 %s2029, %s2033
          %s2035 = smul.addr %s2034, 128
          %s2036 = scalar_lea.hbm %s4, %s2035
          %s2037 = sshll.u32 %s2025, 4
          %s2038 = int_to_ptr.vmem [resolvable:$true] %s2037
          %2043 = dma.vmem_to_hbm [thread:$0]  %s2038, 8192, %s2036, %s2022, 1024, 1024, 64
        $region40: #{curve_aggregation_forward.1} parent=35 // pred_fallthru
          _
      $region36: #{curve_aggregation_forward.1} parent=5 // pred_fallthru
        _
      %p2044 = scmp.le.s32.totalorder 2, %s13
      // Predicated region
      $region41: #{curve_aggregation_forward.1} parent=5 // pred_check
        %p2045 = pneg %p2044
      $region42: #{curve_aggregation_forward.1} parent=5 // pred_check_branch
        %2047 = sbr.rel (%p2045) target = $region44
      $region43: #{curve_aggregation_forward.1} parent=5 // pred_region
        %s2048 = ssub.s32 %s13, 2
        // Predicated region
        $region45: #{curve_aggregation_forward.1} parent=43 // pred_check
          %p2049 = pneg %p157
        $region46: #{curve_aggregation_forward.1} parent=43 // pred_check_branch
          %2051 = sbr.rel (%p2049) target = $region48
        $region47: #{curve_aggregation_forward.1} parent=43 // pred_region
          %s2052 = sand.u32 %s142, 1
          %s2053 = scalar_lea.sflag [#allocation3], %s2052
          %s2054 = sand.u32 %s142, 1
          %s2055 = smul.addr %s2054, 512
          %s2056 = scalar_lea.vmem [#allocation2], %s2055
          %2057 = dma.done %s2053, 8192
        $region48: #{curve_aggregation_forward.1} parent=43 // pred_fallthru
          _
      $region44: #{curve_aggregation_forward.1} parent=5 // pred_fallthru
        _
    $region6: #{curve_aggregation_forward.1} parent=1 // loop_footer
      %s17 = sadd.s32 1, %s13
    $region7: #{curve_aggregation_forward.1} parent=1 // loop_footer_branch
      %12 = sbr.rel target = $region3
    $region8: #{curve_aggregation_forward.1} parent=1 // loop_exit
      _
    %2058 = vsyncpa [#allocation3], 1
    %s2059 = scalar_lea.sflag [#allocation3], 1
    %2060 = vsyncpa %s2059, 1

</llo_original>
